<compile_context>
chip_gen: v6e
topology: v6e:2x2x1
jax: 0.10.0
libtpu: 0.0.40
codegen_flags: <defaults>
</compile_context>

<pallas_src>
import jax
import jax.numpy as jnp
from jax.experimental import pallas as pl
from jax.experimental.pallas import tpu as pltpu


def _round_up(n, m):
    return (n + m - 1) // m * m


def _leaky_relu(x, slope=0.2):
    return jnp.where(x >= 0.0, x, slope * x)


def _generator_kernel(x_ref, w1_ref, b1_ref, w2_ref, b2_ref,
                      w3_ref, b3_ref, w4_ref, b4_ref, o_ref, h3_ref):
    """Fused Generator forward.

    Grid axis 0 tiles layer 4's output (N) dimension.  Layers 1-3 run once on
    the first grid step into the persistent VMEM scratch h3_ref; every step
    then computes one lane-dense tile of layer 4 + tanh.
    Dot operands are cast to the weight dtype (no-op for f32 weights, bf16
    MXU single-pass for bf16 weights); accumulation + elementwise stay f32.
    """
    @pl.when(pl.program_id(0) == 0)
    def _():
        h = jnp.dot(x_ref[...].astype(w1_ref.dtype), w1_ref[...],
                    preferred_element_type=jnp.float32)
        h = _leaky_relu(h + b1_ref[...])
        h = jnp.dot(h.astype(w2_ref.dtype), w2_ref[...],
                    preferred_element_type=jnp.float32)
        h = _leaky_relu(h + b2_ref[...])
        h = jnp.dot(h.astype(w3_ref.dtype), w3_ref[...],
                    preferred_element_type=jnp.float32)
        h3_ref[...] = _leaky_relu(h + b3_ref[...])

    h4 = jnp.dot(h3_ref[...].astype(w4_ref.dtype), w4_ref[...],
                 preferred_element_type=jnp.float32)
    o_ref[...] = jnp.tanh(h4 + b4_ref[...]).astype(o_ref.dtype)


def prepare_generator_params(raw_params, weights_dtype=jnp.float32):
    """One-time prep outside the per-call hot path.

    * Zero-pads W1's input dim (100 -> 128, lane width) so the first MXU LHS
      tile is dense; zero rows leave the math unchanged.
    * Optionally casts weights to bf16 (halves the HBM-bound weight bytes);
      biases stay f32 so all elementwise math remains f32.
    """
    (w1, b1) = raw_params[0]
    k_pad = _round_up(w1.shape[0], 128)
    w1 = jnp.pad(w1, ((0, k_pad - w1.shape[0]), (0, 0)))
    prepped = [(w1.astype(weights_dtype), b1.astype(jnp.float32))]
    for w, b in raw_params[1:]:
        prepped.append((w.astype(weights_dtype), b.astype(jnp.float32)))
    return prepped


def generator_forward(params, x, *, tile_n=None):
    """x: [B, 100] -> [B, dim**2].  `params` must come from prepare_generator_params."""
    (w1, b1), (w2, b2), (w3, b3), (w4, b4) = params
    B, din = x.shape
    k_pad, d1 = w1.shape
    d2 = w2.shape[1]
    d3, dout = w4.shape

    # Per-call padding of the activation only (weights were padded at prep
    # time): batch -> f32 sublane multiple (>=8), K -> W1's padded input dim.
    b_pad = max(8, _round_up(B, 8))
    x_p = jnp.pad(x, ((0, b_pad - B), (0, k_pad - din)))

    # Tile layer 4's N dimension (73% of the weight bytes) so its DMA is
    # double-buffered behind compute; tiles are lane-dense (multiple of 128).
    if tile_n is None:
        tile_n = next((t for t in (512, 256, 128) if dout % t == 0), dout)
    n_tiles = dout // tile_n

    def _resident(shape):  # whole array in VMEM, same block every grid step
        return pl.BlockSpec(shape, lambda j: (0, 0))

    in_specs = [
        _resident(x_p.shape),
        _resident(w1.shape), _resident(b1.shape),
        _resident(w2.shape), _resident(b2.shape),
        _resident(w3.shape), _resident(b3.shape),
        pl.BlockSpec((d3, tile_n), lambda j: (0, j)),   # W4 N-tile
        pl.BlockSpec((1, tile_n), lambda j: (0, j)),    # b4 N-tile
    ]
    out_specs = pl.BlockSpec((b_pad, tile_n), lambda j: (0, j))

    inputs = (x_p, w1, b1, w2, b2, w3, b3, w4, b4)

    # Advisory cost hint for the XLA scheduler.
    flops = 2 * b_pad * (k_pad * d1 + d1 * d2 + d2 * d3 + d3 * dout)
    bytes_accessed = (sum(a.size * a.dtype.itemsize for a in inputs)
                      + b_pad * dout * 4)
    cost = pl.CostEstimate(flops=flops, transcendentals=b_pad * dout,
                           bytes_accessed=bytes_accessed)

    # Size the scoped VMEM limit from the actual (double-buffered) footprint so
    # larger `dim` still compiles without hitting the 16/32 MiB defaults.
    const_bytes = sum(a.size * a.dtype.itemsize for a in inputs[:7])
    tile_bytes = (d3 * tile_n + tile_n) * w4.dtype.itemsize + b_pad * tile_n * 4
    scratch_bytes = b_pad * d3 * 4
    vmem_needed = 2 * (const_bytes + tile_bytes) + scratch_bytes
    vmem_limit = int(min(128 * 1024 * 1024,
                         max(32 * 1024 * 1024, (vmem_needed * 3) // 2)))

    out = pl.pallas_call(
        _generator_kernel,
        out_shape=jax.ShapeDtypeStruct((b_pad, dout), jnp.float32),
        grid_spec=pltpu.PrefetchScalarGridSpec(
            num_scalar_prefetch=0,
            grid=(n_tiles,),
            in_specs=in_specs,
            out_specs=out_specs,
            scratch_shapes=[pltpu.VMEM((b_pad, d3), jnp.float32)],
        ),
        compiler_params=pltpu.CompilerParams(
            dimension_semantics=("arbitrary",),
            vmem_limit_bytes=vmem_limit,
        ),
        cost_estimate=cost,
    )(*inputs)
    return out[:B]


def init_generator_params(key, dim, dtype=jnp.float32):
    """Deterministic synthetic params mirroring nn.Linear shapes of Generator(dim).

    Weights are stored as [in_features, out_features] (== PyTorch weight.T) so
    the kernel computes y = x @ W + b.
    """
    sizes = [100, dim ** 2 // 8, dim ** 2 // 4, dim ** 2 // 2, dim ** 2]
    params = []
    for i in range(4):
        din, dout = sizes[i], sizes[i + 1]
        key, kw, kb = jax.random.split(key, 3)
        bound = 1.0 / float(din) ** 0.5
        w = jax.random.uniform(kw, (din, dout), dtype, -bound, bound)
        b = jax.random.uniform(kb, (1, dout), dtype, -bound, bound)
        params.append((w, b))
    return params


if __name__ == "__main__":
    dim = 32            # Generator(dim=32): 100 -> 128 -> 256 -> 512 -> 1024
    batch = 2
    key = jax.random.PRNGKey(0)
    kx, kp = jax.random.split(key)
    x = jax.random.normal(kx, (batch, 100), jnp.float32)
    raw_params = init_generator_params(kp, dim)

    # Pure-JAX reference (same math, no Pallas, no padding).  Default matmul
    # precision matches the kernel's f32 dot lowering (validated empirically).
    def ref(raw, x):
        h = x
        for i, (w, b) in enumerate(raw):
            h = h @ w + b
            h = jnp.where(h >= 0, h, 0.2 * h) if i < 3 else jnp.tanh(h)
        return h

    expected = ref(raw_params, x)
    fwd = jax.jit(generator_forward)

    # f32 weights: tight tolerance.
    params_f32 = prepare_generator_params(raw_params, jnp.float32)
    out_f32 = jax.block_until_ready(fwd(params_f32, x))
    assert out_f32.shape == (batch, dim ** 2)
    assert jnp.allclose(out_f32, expected, atol=1e-5, rtol=1e-5)

    # bf16 weights (halved HBM-bound weight bytes): looser tolerance vs f32 ref.
    params_bf16 = prepare_generator_params(raw_params, jnp.bfloat16)
    out_bf16 = jax.block_until_ready(fwd(params_bf16, x))
    assert out_bf16.shape == (batch, dim ** 2)
    assert jnp.allclose(out_bf16, expected, atol=3e-2, rtol=3e-2)

    print("KERNEL_OK")
</pallas_src>

<mosaic_0001>
module attributes {stable_mosaic.version = 11 : i64} {
  func.func @_generator_kernel(%arg0: i32, %arg1: memref<8x128xf32, #tpu.memory_space<vmem>>, %arg2: memref<128x128xf32, #tpu.memory_space<vmem>>, %arg3: memref<1x128xf32, #tpu.memory_space<vmem>>, %arg4: memref<128x256xf32, #tpu.memory_space<vmem>>, %arg5: memref<1x256xf32, #tpu.memory_space<vmem>>, %arg6: memref<256x512xf32, #tpu.memory_space<vmem>>, %arg7: memref<1x512xf32, #tpu.memory_space<vmem>>, %arg8: memref<512x512xf32, #tpu.memory_space<vmem>>, %arg9: memref<1x512xf32, #tpu.memory_space<vmem>>, %arg10: memref<8x512xf32, #tpu.memory_space<vmem>>, %arg11: memref<8x512xf32, #tpu.memory_space<vmem>>) attributes {dimension_semantics = [#tpu.dimension_semantics<arbitrary>], iteration_bounds = array<i64: 2>, scalar_prefetch = 0 : i64, scratch_operands = 1 : i64, tpu.core_type = #tpu.core_type<tc>, window_params = [{pipeline_mode = #tpu.pipeline_mode<synchronous>, transform_indices = @transform_0, window_bounds = array<i64: 8, 128>}, {pipeline_mode = #tpu.pipeline_mode<synchronous>, transform_indices = @transform_1, window_bounds = array<i64: 128, 128>}, {pipeline_mode = #tpu.pipeline_mode<synchronous>, transform_indices = @transform_2, window_bounds = array<i64: 1, 128>}, {pipeline_mode = #tpu.pipeline_mode<synchronous>, transform_indices = @transform_3, window_bounds = array<i64: 128, 256>}, {pipeline_mode = #tpu.pipeline_mode<synchronous>, transform_indices = @transform_4, window_bounds = array<i64: 1, 256>}, {pipeline_mode = #tpu.pipeline_mode<synchronous>, transform_indices = @transform_5, window_bounds = array<i64: 256, 512>}, {pipeline_mode = #tpu.pipeline_mode<synchronous>, transform_indices = @transform_6, window_bounds = array<i64: 1, 512>}, {transform_indices = @transform_7, window_bounds = array<i64: 512, 512>}, {transform_indices = @transform_8, window_bounds = array<i64: 1, 512>}, {transform_indices = @transform_9, window_bounds = array<i64: 8, 512>}]} {
    %c0_i32 = arith.constant 0 : i32
    %0 = arith.cmpi eq, %arg0, %c0_i32 : i32
    %1 = arith.extui %0 : i1 to i32
    %c0_i32_0 = arith.constant 0 : i32
    %2 = arith.cmpi ne, %1, %c0_i32_0 : i32
    scf.if %2 {
      %c0_8 = arith.constant 0 : index
      %c0_9 = arith.constant 0 : index
      %11 = vector.load %arg1[%c0_8, %c0_9] : memref<8x128xf32, #tpu.memory_space<vmem>>, vector<8x128xf32>
      %c0_10 = arith.constant 0 : index
      %c0_11 = arith.constant 0 : index
      %12 = vector.load %arg2[%c0_10, %c0_11] : memref<128x128xf32, #tpu.memory_space<vmem>>, vector<128x128xf32>
      %cst_12 = arith.constant dense<0.000000e+00> : vector<8x128xf32>
      %13 = tpu.matmul %11, %12, %cst_12 {dimension_numbers = #tpu.dot_dimension_numbers<[1], [0], [0], [1], [0, 0, 1, 1], [], []>} : vector<8x128xf32>, vector<128x128xf32>, vector<8x128xf32> -> vector<8x128xf32>
      %c0_13 = arith.constant 0 : index
      %c0_14 = arith.constant 0 : index
      %14 = vector.load %arg3[%c0_13, %c0_14] : memref<1x128xf32, #tpu.memory_space<vmem>>, vector<1x128xf32>
      %15 = vector.broadcast %14 : vector<1x128xf32> to vector<8x128xf32>
      %16 = arith.addf %13, %15 : vector<8x128xf32>
      %cst_15 = arith.constant 0.000000e+00 : f32
      %17 = vector.broadcast %cst_15 : f32 to vector<8x128xf32>
      %18 = arith.cmpf oge, %16, %17 : vector<8x128xf32>
      %cst_16 = arith.constant 2.000000e-01 : f32
      %19 = vector.broadcast %cst_16 : f32 to vector<8x128xf32>
      %20 = arith.mulf %19, %16 : vector<8x128xf32>
      %21 = arith.select %18, %16, %20 : vector<8x128xi1>, vector<8x128xf32>
      %c0_17 = arith.constant 0 : index
      %c0_18 = arith.constant 0 : index
      %22 = vector.load %arg4[%c0_17, %c0_18] : memref<128x256xf32, #tpu.memory_space<vmem>>, vector<128x256xf32>
      %cst_19 = arith.constant dense<0.000000e+00> : vector<8x256xf32>
      %23 = tpu.matmul %21, %22, %cst_19 {dimension_numbers = #tpu.dot_dimension_numbers<[1], [0], [0], [1], [0, 0, 1, 1], [], []>} : vector<8x128xf32>, vector<128x256xf32>, vector<8x256xf32> -> vector<8x256xf32>
      %c0_20 = arith.constant 0 : index
      %c0_21 = arith.constant 0 : index
      %24 = vector.load %arg5[%c0_20, %c0_21] : memref<1x256xf32, #tpu.memory_space<vmem>>, vector<1x256xf32>
      %25 = vector.broadcast %24 : vector<1x256xf32> to vector<8x256xf32>
      %26 = arith.addf %23, %25 : vector<8x256xf32>
      %cst_22 = arith.constant 0.000000e+00 : f32
      %27 = vector.broadcast %cst_22 : f32 to vector<8x256xf32>
      %28 = arith.cmpf oge, %26, %27 : vector<8x256xf32>
      %cst_23 = arith.constant 2.000000e-01 : f32
      %29 = vector.broadcast %cst_23 : f32 to vector<8x256xf32>
      %30 = arith.mulf %29, %26 : vector<8x256xf32>
      %31 = arith.select %28, %26, %30 : vector<8x256xi1>, vector<8x256xf32>
      %c0_24 = arith.constant 0 : index
      %c0_25 = arith.constant 0 : index
      %32 = vector.load %arg6[%c0_24, %c0_25] : memref<256x512xf32, #tpu.memory_space<vmem>>, vector<256x512xf32>
      %cst_26 = arith.constant dense<0.000000e+00> : vector<8x512xf32>
      %33 = tpu.matmul %31, %32, %cst_26 {dimension_numbers = #tpu.dot_dimension_numbers<[1], [0], [0], [1], [0, 0, 1, 1], [], []>} : vector<8x256xf32>, vector<256x512xf32>, vector<8x512xf32> -> vector<8x512xf32>
      %c0_27 = arith.constant 0 : index
      %c0_28 = arith.constant 0 : index
      %34 = vector.load %arg7[%c0_27, %c0_28] : memref<1x512xf32, #tpu.memory_space<vmem>>, vector<1x512xf32>
      %35 = vector.broadcast %34 : vector<1x512xf32> to vector<8x512xf32>
      %36 = arith.addf %33, %35 : vector<8x512xf32>
      %cst_29 = arith.constant 0.000000e+00 : f32
      %37 = vector.broadcast %cst_29 : f32 to vector<8x512xf32>
      %38 = arith.cmpf oge, %36, %37 : vector<8x512xf32>
      %cst_30 = arith.constant 2.000000e-01 : f32
      %39 = vector.broadcast %cst_30 : f32 to vector<8x512xf32>
      %40 = arith.mulf %39, %36 : vector<8x512xf32>
      %41 = arith.select %38, %36, %40 : vector<8x512xi1>, vector<8x512xf32>
      %c0_31 = arith.constant 0 : index
      %c0_32 = arith.constant 0 : index
      %42 = vector.load %arg11[%c0_31, %c0_32] : memref<8x512xf32, #tpu.memory_space<vmem>>, vector<8x512xf32>
      tpu.vector_store %arg11[%c0_31, %c0_32], %41 {strides = array<i32>} : memref<8x512xf32, #tpu.memory_space<vmem>>, vector<8x512xf32>,
    } else {
    }
    %c0 = arith.constant 0 : index
    %c0_1 = arith.constant 0 : index
    %3 = vector.load %arg11[%c0, %c0_1] : memref<8x512xf32, #tpu.memory_space<vmem>>, vector<8x512xf32>
    %c0_2 = arith.constant 0 : index
    %c0_3 = arith.constant 0 : index
    %4 = vector.load %arg8[%c0_2, %c0_3] : memref<512x512xf32, #tpu.memory_space<vmem>>, vector<512x512xf32>
    %cst = arith.constant dense<0.000000e+00> : vector<8x512xf32>
    %5 = tpu.matmul %3, %4, %cst {dimension_numbers = #tpu.dot_dimension_numbers<[1], [0], [0], [1], [0, 0, 1, 1], [], []>} : vector<8x512xf32>, vector<512x512xf32>, vector<8x512xf32> -> vector<8x512xf32>
    %c0_4 = arith.constant 0 : index
    %c0_5 = arith.constant 0 : index
    %6 = vector.load %arg9[%c0_4, %c0_5] : memref<1x512xf32, #tpu.memory_space<vmem>>, vector<1x512xf32>
    %7 = vector.broadcast %6 : vector<1x512xf32> to vector<8x512xf32>
    %8 = arith.addf %5, %7 : vector<8x512xf32>
    %9 = math.tanh %8 : vector<8x512xf32>
    %c0_6 = arith.constant 0 : index
    %c0_7 = arith.constant 0 : index
    %10 = vector.load %arg10[%c0_6, %c0_7] : memref<8x512xf32, #tpu.memory_space<vmem>>, vector<8x512xf32>
    tpu.vector_store %arg10[%c0_6, %c0_7], %9 {strides = array<i32>} : memref<8x512xf32, #tpu.memory_space<vmem>>, vector<8x512xf32>,
    return
  }
  func.func @transform_0(%arg0: i32) -> (i32, i32) {
    %c0_i32 = arith.constant 0 : i32
    %c0_i32_0 = arith.constant 0 : i32
    %c0_i32_1 = arith.constant 0 : i32
    return %c0_i32, %c0_i32_0 : i32, i32
  }
  func.func @transform_1(%arg0: i32) -> (i32, i32) {
    %c0_i32 = arith.constant 0 : i32
    %c0_i32_0 = arith.constant 0 : i32
    %c0_i32_1 = arith.constant 0 : i32
    return %c0_i32, %c0_i32_0 : i32, i32
  }
  func.func @transform_2(%arg0: i32) -> (i32, i32) {
    %c0_i32 = arith.constant 0 : i32
    %c0_i32_0 = arith.constant 0 : i32
    %c0_i32_1 = arith.constant 0 : i32
    return %c0_i32, %c0_i32_0 : i32, i32
  }
  func.func @transform_3(%arg0: i32) -> (i32, i32) {
    %c0_i32 = arith.constant 0 : i32
    %c0_i32_0 = arith.constant 0 : i32
    %c0_i32_1 = arith.constant 0 : i32
    return %c0_i32, %c0_i32_0 : i32, i32
  }
  func.func @transform_4(%arg0: i32) -> (i32, i32) {
    %c0_i32 = arith.constant 0 : i32
    %c0_i32_0 = arith.constant 0 : i32
    %c0_i32_1 = arith.constant 0 : i32
    return %c0_i32, %c0_i32_0 : i32, i32
  }
  func.func @transform_5(%arg0: i32) -> (i32, i32) {
    %c0_i32 = arith.constant 0 : i32
    %c0_i32_0 = arith.constant 0 : i32
    %c0_i32_1 = arith.constant 0 : i32
    return %c0_i32, %c0_i32_0 : i32, i32
  }
  func.func @transform_6(%arg0: i32) -> (i32, i32) {
    %c0_i32 = arith.constant 0 : i32
    %c0_i32_0 = arith.constant 0 : i32
    %c0_i32_1 = arith.constant 0 : i32
    return %c0_i32, %c0_i32_0 : i32, i32
  }
  func.func @transform_7(%arg0: i32) -> (i32, i32) {
    %c0_i32 = arith.constant 0 : i32
    %c0_i32_0 = arith.constant 0 : i32
    return %c0_i32, %arg0 : i32, i32
  }
  func.func @transform_8(%arg0: i32) -> (i32, i32) {
    %c0_i32 = arith.constant 0 : i32
    %c0_i32_0 = arith.constant 0 : i32
    return %c0_i32, %arg0 : i32, i32
  }
  func.func @transform_9(%arg0: i32) -> (i32, i32) {
    %c0_i32 = arith.constant 0 : i32
    %c0_i32_0 = arith.constant 0 : i32
    return %c0_i32, %arg0 : i32, i32
  }
}

</mosaic_0001>

<llo_original>
// kernel: generator_forward.1
$region0: #{generator_forward.1}
  #allocation0 [shape = 'u32[]', space=smem, size = 0x4, offset = 0x4, fixed_abs, tag = 'smem constant byte address 0x4 - core index']
  #allocation1 [shape = 'u32[144,128]{1,0:T(1,128)}', space=vmem, size = 0x12000, scoped, tag = 'internal scratch']
  #allocation2 [shape = 'f32[8,512]{1,0:T(8,128)}', space=vmem, size = 0x4000, scoped, tag = 'scratch operand']
  %s0 = inlined_call_operand.vmem [shape: f32[8,128], index: 0, kind: input, shape index: {}]
  %s1 = inlined_call_operand.hbm [shape: f32[128,128], index: 1, kind: input, shape index: {}]
  %s2 = inlined_call_operand.hbm [shape: f32[1,128], index: 2, kind: input, shape index: {}]
  %s3 = inlined_call_operand.hbm [shape: f32[128,256], index: 3, kind: input, shape index: {}]
  %s4 = inlined_call_operand.hbm [shape: f32[1,256], index: 4, kind: input, shape index: {}]
  %s5 = inlined_call_operand.hbm [shape: f32[256,512], index: 5, kind: input, shape index: {}]
  %s6 = inlined_call_operand.hbm [shape: f32[1,512], index: 6, kind: input, shape index: {}]
  %s7 = inlined_call_operand.hbm [shape: f32[512,1024], index: 7, kind: input, shape index: {}]
  %s8 = inlined_call_operand.hbm [shape: f32[1,1024], index: 8, kind: input, shape index: {}]
  %s9 = inlined_call_operand.vmem [shape: f32[8,1024], index: 9, kind: output, shape index: {}]
  %s10 = sld [smem:[#allocation0]]
  $region105: #{generator_forward.1} parent=0
    _
  %s12 = ssub.s32 1, %s10
  %s13 = scalar_select 0, %s12, %s10
  $region1: #{generator_forward.1} parent=0
    #allocation3 [shape = 'u8[65536]{0}', space=vmem, size = 0x10000, scoped, tag = 'input window, operand 1, single buffered']
    #allocation4 [shape = 's32[2]{0}', space=sflag, size = 0x8, scoped, tag = 'scoped memory for generator_forward.1']
    #allocation5 [shape = 'u8[512]{0}', space=vmem, size = 0x400, scoped, tag = 'input window, operand 2, single buffered']
    #allocation6 [shape = 's32[1]{0}', space=sflag, size = 0x4, scoped, tag = 'scoped memory for generator_forward.1']
    #allocation7 [shape = 'u8[131072]{0}', space=vmem, size = 0x20000, scoped, tag = 'input window, operand 3, single buffered']
    #allocation8 [shape = 'u8[1024]{0}', space=vmem, size = 0x400, scoped, tag = 'input window, operand 4, single buffered']
    #allocation9 [shape = 's32[1]{0}', space=sflag, size = 0x4, scoped, tag = 'scoped memory for generator_forward.1']
    #allocation10 [shape = 'u8[524288]{0}', space=vmem, size = 0x80000, scoped, tag = 'input window, operand 5, single buffered']
    #allocation11 [shape = 'u8[2048]{0}', space=vmem, size = 0x800, scoped, tag = 'input window, operand 6, single buffered']
    #allocation12 [shape = 's32[1]{0}', space=sflag, size = 0x4, scoped, tag = 'scoped memory for generator_forward.1']
    #allocation13 [shape = 'u8[2097152]{0}', space=vmem, size = 0x200000, scoped, tag = 'input window, operand 7']
    #allocation14 [shape = 'u8[4096]{0}', space=vmem, size = 0x1000, scoped, tag = 'input window, operand 8']
    %14 = vsyncpa [#allocation4], 0
    %15 = vsyncpa [#allocation6], 0
    %16 = vsyncpa [#allocation9], 0
    %17 = vsyncpa [#allocation12], 0
    loop: start=0, step=1, limit=4
    $region2: #{generator_forward.1} parent=1 // loop_pre_header
      _
    $region3: #{generator_forward.1} parent=1 // loop_header
      %s19 = sphi 0, %s23
      %p20 = scmp.ge.s32.totalorder %s19, 4
      %s27 = sphi 0, %s27
      %s29 = sphi 0, %s27
      %s30 = sphi 0, %s29
      %s44 = sphi 0, %s30
      %s48 = sphi 0, %s48
      %s50 = sphi 0, %s48
      %s51 = sphi 0, %s50
      %s65 = sphi 0, %s51
      %s69 = sphi 0, %s69
      %s71 = sphi 0, %s69
      %s72 = sphi 0, %s71
      %s86 = sphi 0, %s72
      %s90 = sphi 0, %s90
      %s92 = sphi 0, %s90
      %s93 = sphi 0, %s92
      %s107 = sphi 0, %s93
      %s111 = sphi 0, %s111
      %s113 = sphi 0, %s111
      %s114 = sphi 0, %s113
      %s128 = sphi 0, %s114
      %s132 = sphi 0, %s132
      %s134 = sphi 0, %s132
      %s135 = sphi 0, %s134
      %s149 = sphi 0, %s135
      %s153 = sphi 0, %s153
      %s155 = sphi 0, %s153
      %s156 = sphi 0, %s155
      %s170 = sphi 0, %s156
      %s176 = sphi 0, %s178
      %s179 = sphi 0, %s176
      %s180 = sphi 0, %s179
      %s196 = sphi 0, %s180
      %s202 = sphi 0, %s204
      %s205 = sphi 0, %s202
      %s206 = sphi 0, %s205
      %s222 = sphi 0, %s206
      %s228 = sphi 0, %s230
      %s231 = sphi 0, %s228
      %s232 = sphi 0, %s231
      %s248 = sphi 0, %s232
    $region4: #{generator_forward.1} parent=1 // loop_header_branch
      %22 = sbr.rel (%p20) target = $region8
    $region5: #{generator_forward.1} parent=1 // loop_body
      %s24 = ssub.s32 %s19, 1
      %s25 = ssub.s32 %s19, 2
      %s26 = sadd.s32 %s19, 1
      %s28 = sadd.s32 %s27, 1
      %p31 = scmp.eq.s32.totalorder %s19, 1
      %p32 = scmp.ne.s32.totalorder %s27, %s29
      %p33 = scmp.eq.s32.totalorder %s19, 0
      %p34 = por %p32, %p33
      %p35 = scmp.ne.s32.totalorder %s27, %s29
      %p36 = scmp.eq.s32.totalorder %s24, 1
      %p37 = por %p35, %p36
      %p38 = scmp.ne.s32.totalorder %s29, %s30
      %p39 = scmp.eq.s32.totalorder %s24, 0
      %p40 = por %p38, %p39
      %p41 = scmp.ne.s32.totalorder %s29, %s30
      %p42 = scmp.eq.s32.totalorder %s25, 1
      %p43 = por %p41, %p42
      %p45 = scmp.ne.s32.totalorder %s30, %s44
      %p46 = scmp.eq.s32.totalorder %s25, 0
      %p47 = por %p45, %p46
      %s49 = sadd.s32 %s48, 1
      %p52 = scmp.eq.s32.totalorder %s19, 1
      %p53 = scmp.ne.s32.totalorder %s48, %s50
      %p54 = scmp.eq.s32.totalorder %s19, 0
      %p55 = por %p53, %p54
      %p56 = scmp.ne.s32.totalorder %s48, %s50
      %p57 = scmp.eq.s32.totalorder %s24, 1
      %p58 = por %p56, %p57
      %p59 = scmp.ne.s32.totalorder %s50, %s51
      %p60 = scmp.eq.s32.totalorder %s24, 0
      %p61 = por %p59, %p60
      %p62 = scmp.ne.s32.totalorder %s50, %s51
      %p63 = scmp.eq.s32.totalorder %s25, 1
      %p64 = por %p62, %p63
      %p66 = scmp.ne.s32.totalorder %s51, %s65
      %p67 = scmp.eq.s32.totalorder %s25, 0
      %p68 = por %p66, %p67
      %s70 = sadd.s32 %s69, 1
      %p73 = scmp.eq.s32.totalorder %s19, 1
      %p74 = scmp.ne.s32.totalorder %s69, %s71
      %p75 = scmp.eq.s32.totalorder %s19, 0
      %p76 = por %p74, %p75
      %p77 = scmp.ne.s32.totalorder %s69, %s71
      %p78 = scmp.eq.s32.totalorder %s24, 1
      %p79 = por %p77, %p78
      %p80 = scmp.ne.s32.totalorder %s71, %s72
      %p81 = scmp.eq.s32.totalorder %s24, 0
      %p82 = por %p80, %p81
      %p83 = scmp.ne.s32.totalorder %s71, %s72
      %p84 = scmp.eq.s32.totalorder %s25, 1
      %p85 = por %p83, %p84
      %p87 = scmp.ne.s32.totalorder %s72, %s86
      %p88 = scmp.eq.s32.totalorder %s25, 0
      %p89 = por %p87, %p88
      %s91 = sadd.s32 %s90, 1
      %p94 = scmp.eq.s32.totalorder %s19, 1
      %p95 = scmp.ne.s32.totalorder %s90, %s92
      %p96 = scmp.eq.s32.totalorder %s19, 0
      %p97 = por %p95, %p96
      %p98 = scmp.ne.s32.totalorder %s90, %s92
      %p99 = scmp.eq.s32.totalorder %s24, 1
      %p100 = por %p98, %p99
      %p101 = scmp.ne.s32.totalorder %s92, %s93
      %p102 = scmp.eq.s32.totalorder %s24, 0
      %p103 = por %p101, %p102
      %p104 = scmp.ne.s32.totalorder %s92, %s93
      %p105 = scmp.eq.s32.totalorder %s25, 1
      %p106 = por %p104, %p105
      %p108 = scmp.ne.s32.totalorder %s93, %s107
      %p109 = scmp.eq.s32.totalorder %s25, 0
      %p110 = por %p108, %p109
      %s112 = sadd.s32 %s111, 1
      %p115 = scmp.eq.s32.totalorder %s19, 1
      %p116 = scmp.ne.s32.totalorder %s111, %s113
      %p117 = scmp.eq.s32.totalorder %s19, 0
      %p118 = por %p116, %p117
      %p119 = scmp.ne.s32.totalorder %s111, %s113
      %p120 = scmp.eq.s32.totalorder %s24, 1
      %p121 = por %p119, %p120
      %p122 = scmp.ne.s32.totalorder %s113, %s114
      %p123 = scmp.eq.s32.totalorder %s24, 0
      %p124 = por %p122, %p123
      %p125 = scmp.ne.s32.totalorder %s113, %s114
      %p126 = scmp.eq.s32.totalorder %s25, 1
      %p127 = por %p125, %p126
      %p129 = scmp.ne.s32.totalorder %s114, %s128
      %p130 = scmp.eq.s32.totalorder %s25, 0
      %p131 = por %p129, %p130
      %s133 = sadd.s32 %s132, 1
      %p136 = scmp.eq.s32.totalorder %s19, 1
      %p137 = scmp.ne.s32.totalorder %s132, %s134
      %p138 = scmp.eq.s32.totalorder %s19, 0
      %p139 = por %p137, %p138
      %p140 = scmp.ne.s32.totalorder %s132, %s134
      %p141 = scmp.eq.s32.totalorder %s24, 1
      %p142 = por %p140, %p141
      %p143 = scmp.ne.s32.totalorder %s134, %s135
      %p144 = scmp.eq.s32.totalorder %s24, 0
      %p145 = por %p143, %p144
      %p146 = scmp.ne.s32.totalorder %s134, %s135
      %p147 = scmp.eq.s32.totalorder %s25, 1
      %p148 = por %p146, %p147
      %p150 = scmp.ne.s32.totalorder %s135, %s149
      %p151 = scmp.eq.s32.totalorder %s25, 0
      %p152 = por %p150, %p151
      %s154 = sadd.s32 %s153, 1
      %p157 = scmp.eq.s32.totalorder %s19, 1
      %p158 = scmp.ne.s32.totalorder %s153, %s155
      %p159 = scmp.eq.s32.totalorder %s19, 0
      %p160 = por %p158, %p159
      %p161 = scmp.ne.s32.totalorder %s153, %s155
      %p162 = scmp.eq.s32.totalorder %s24, 1
      %p163 = por %p161, %p162
      %p164 = scmp.ne.s32.totalorder %s155, %s156
      %p165 = scmp.eq.s32.totalorder %s24, 0
      %p166 = por %p164, %p165
      %p167 = scmp.ne.s32.totalorder %s155, %s156
      %p168 = scmp.eq.s32.totalorder %s25, 1
      %p169 = por %p167, %p168
      %p171 = scmp.ne.s32.totalorder %s156, %s170
      %p172 = scmp.eq.s32.totalorder %s25, 0
      %p173 = por %p171, %p172
      %s174 = ssub.s32 %s19, %s26
      %p175 = scmp.eq.s32.totalorder %s174, 0
      %s177 = sadd.s32 %s176, 1
      %s178 = scalar_select %p175, %s176, %s177
      %p181 = pneg %p175
      %p182 = scmp.eq.s32.totalorder %s19, 1
      %p183 = por %p181, %p182
      %p184 = scmp.ne.s32.totalorder %s176, %s179
      %p185 = scmp.eq.s32.totalorder %s19, 0
      %p186 = por %p184, %p185
      %p187 = scmp.ne.s32.totalorder %s176, %s179
      %p188 = scmp.eq.s32.totalorder %s24, 1
      %p189 = por %p187, %p188
      %p190 = scmp.ne.s32.totalorder %s179, %s180
      %p191 = scmp.eq.s32.totalorder %s24, 0
      %p192 = por %p190, %p191
      %p193 = scmp.ne.s32.totalorder %s179, %s180
      %p194 = scmp.eq.s32.totalorder %s25, 1
      %p195 = por %p193, %p194
      %p197 = scmp.ne.s32.totalorder %s180, %s196
      %p198 = scmp.eq.s32.totalorder %s25, 0
      %p199 = por %p197, %p198
      %s200 = ssub.s32 %s19, %s26
      %p201 = scmp.eq.s32.totalorder %s200, 0
      %s203 = sadd.s32 %s202, 1
      %s204 = scalar_select %p201, %s202, %s203
      %p207 = pneg %p201
      %p208 = scmp.eq.s32.totalorder %s19, 1
      %p209 = por %p207, %p208
      %p210 = scmp.ne.s32.totalorder %s202, %s205
      %p211 = scmp.eq.s32.totalorder %s19, 0
      %p212 = por %p210, %p211
      %p213 = scmp.ne.s32.totalorder %s202, %s205
      %p214 = scmp.eq.s32.totalorder %s24, 1
      %p215 = por %p213, %p214
      %p216 = scmp.ne.s32.totalorder %s205, %s206
      %p217 = scmp.eq.s32.totalorder %s24, 0
      %p218 = por %p216, %p217
      %p219 = scmp.ne.s32.totalorder %s205, %s206
      %p220 = scmp.eq.s32.totalorder %s25, 1
      %p221 = por %p219, %p220
      %p223 = scmp.ne.s32.totalorder %s206, %s222
      %p224 = scmp.eq.s32.totalorder %s25, 0
      %p225 = por %p223, %p224
      %s226 = ssub.s32 %s19, %s26
      %p227 = scmp.eq.s32.totalorder %s226, 0
      %s229 = sadd.s32 %s228, 1
      %s230 = scalar_select %p227, %s228, %s229
      %p233 = pneg %p227
      %p234 = scmp.eq.s32.totalorder %s19, 1
      %p235 = por %p233, %p234
      %p236 = scmp.ne.s32.totalorder %s228, %s231
      %p237 = scmp.eq.s32.totalorder %s19, 0
      %p238 = por %p236, %p237
      %p239 = scmp.ne.s32.totalorder %s228, %s231
      %p240 = scmp.eq.s32.totalorder %s24, 1
      %p241 = por %p239, %p240
      %p242 = scmp.ne.s32.totalorder %s231, %s232
      %p243 = scmp.eq.s32.totalorder %s24, 0
      %p244 = por %p242, %p243
      %p245 = scmp.ne.s32.totalorder %s231, %s232
      %p246 = scmp.eq.s32.totalorder %s25, 1
      %p247 = por %p245, %p246
      %p249 = scmp.ne.s32.totalorder %s232, %s248
      %p250 = scmp.eq.s32.totalorder %s25, 0
      %p251 = por %p249, %p250
      %p252 = scmp.le.s32.totalorder 1, %s19
      %p253 = scmp.lt.s32.totalorder %s19, 3
      %p254 = pnand %p252, %p253
      %p255 = pneg %p254
      // Predicated region
      $region9: #{generator_forward.1} parent=5 // pred_check
        _
      $region10: #{generator_forward.1} parent=5 // pred_check_branch
        %257 = sbr.rel (%p254) target = $region12
      $region11: #{generator_forward.1} parent=5 // pred_region
        %s258 = ssub.s32 %s19, 1
        // Predicated region
        $region13: #{generator_forward.1} parent=11 // pred_check
          %p259 = pneg %p40
        $region14: #{generator_forward.1} parent=11 // pred_check_branch
          %261 = sbr.rel (%p259) target = $region16
        $region15: #{generator_forward.1} parent=11 // pred_region
          _
        $region16: #{generator_forward.1} parent=11 // pred_fallthru
          _
        // Predicated region
        $region17: #{generator_forward.1} parent=11 // pred_check
          %p262 = pneg %p61
        $region18: #{generator_forward.1} parent=11 // pred_check_branch
          %264 = sbr.rel (%p262) target = $region20
        $region19: #{generator_forward.1} parent=11 // pred_region
          %s266 = ssub.s32 2048, 2048
          %267 = vsyncadd [#allocation4], %s266
          %s268 = sshll.u32 [#allocation3], 4
          %s269 = int_to_ptr.vmem [resolvable:$true] %s268
          %274 = dma.hbm_to_vmem [thread:$0]  %s1, 2048, %s269, [#allocation4], 128, 128, 8
        $region20: #{generator_forward.1} parent=11 // pred_fallthru
          _
        // Predicated region
        $region21: #{generator_forward.1} parent=11 // pred_check
          %p275 = pneg %p82
        $region22: #{generator_forward.1} parent=11 // pred_check_branch
          %277 = sbr.rel (%p275) target = $region24
        $region23: #{generator_forward.1} parent=11 // pred_region
          %s279 = ssub.s32 16, 16
          %280 = vsyncadd [#allocation6], %s279
          %s282 = sshll.u32 [#allocation5], 4
          %s283 = int_to_ptr.vmem [resolvable:$true] %s282
          %285 = dma.hbm_to_vmem [thread:$0]  %s2, 16, %s283, [#allocation6]
        $region24: #{generator_forward.1} parent=11 // pred_fallthru
          _
        // Predicated region
        $region25: #{generator_forward.1} parent=11 // pred_check
          %p286 = pneg %p103
        $region26: #{generator_forward.1} parent=11 // pred_check_branch
          %288 = sbr.rel (%p286) target = $region28
        $region27: #{generator_forward.1} parent=11 // pred_region
          %s290 = ssub.s32 4096, 4096
          %291 = vsyncadd [#allocation6], %s290
          %s292 = sshll.u32 [#allocation7], 4
          %s293 = int_to_ptr.vmem [resolvable:$true] %s292
          %298 = dma.hbm_to_vmem [thread:$0]  %s3, 4096, %s293, [#allocation6], 256, 256, 16
        $region28: #{generator_forward.1} parent=11 // pred_fallthru
          _
        // Predicated region
        $region29: #{generator_forward.1} parent=11 // pred_check
          %p299 = pneg %p124
        $region30: #{generator_forward.1} parent=11 // pred_check_branch
          %301 = sbr.rel (%p299) target = $region32
        $region31: #{generator_forward.1} parent=11 // pred_region
          %s303 = ssub.s32 32, 32
          %304 = vsyncadd [#allocation9], %s303
          %s306 = sshll.u32 [#allocation8], 4
          %s307 = int_to_ptr.vmem [resolvable:$true] %s306
          %309 = dma.hbm_to_vmem [thread:$0]  %s4, 32, %s307, [#allocation9]
        $region32: #{generator_forward.1} parent=11 // pred_fallthru
          _
        // Predicated region
        $region33: #{generator_forward.1} parent=11 // pred_check
          %p310 = pneg %p145
        $region34: #{generator_forward.1} parent=11 // pred_check_branch
          %312 = sbr.rel (%p310) target = $region36
        $region35: #{generator_forward.1} parent=11 // pred_region
          %s314 = ssub.s32 16384, 16384
          %315 = vsyncadd [#allocation9], %s314
          %s316 = sshll.u32 [#allocation10], 4
          %s317 = int_to_ptr.vmem [resolvable:$true] %s316
          %322 = dma.hbm_to_vmem [thread:$0]  %s5, 16384, %s317, [#allocation9], 512, 512, 32
        $region36: #{generator_forward.1} parent=11 // pred_fallthru
          _
        // Predicated region
        $region37: #{generator_forward.1} parent=11 // pred_check
          %p323 = pneg %p166
        $region38: #{generator_forward.1} parent=11 // pred_check_branch
          %325 = sbr.rel (%p323) target = $region40
        $region39: #{generator_forward.1} parent=11 // pred_region
          %s327 = ssub.s32 64, 64
          %328 = vsyncadd [#allocation12], %s327
          %s330 = sshll.u32 [#allocation11], 4
          %s331 = int_to_ptr.vmem [resolvable:$true] %s330
          %333 = dma.hbm_to_vmem [thread:$0]  %s6, 64, %s331, [#allocation12]
        $region40: #{generator_forward.1} parent=11 // pred_fallthru
          _
      $region12: #{generator_forward.1} parent=5 // pred_fallthru
        _
      %p334 = scmp.lt.s32.totalorder %s19, 2
      // Predicated region
      $region41: #{generator_forward.1} parent=5 // pred_check
        %p335 = pneg %p334
      $region42: #{generator_forward.1} parent=5 // pred_check_branch
        %337 = sbr.rel (%p335) target = $region44
      $region43: #{generator_forward.1} parent=5 // pred_region
        // Predicated region
        $region45: #{generator_forward.1} parent=43 // pred_check
          %p338 = pneg %p186
        $region46: #{generator_forward.1} parent=43 // pred_check_branch
          %340 = sbr.rel (%p338) target = $region48
        $region47: #{generator_forward.1} parent=43 // pred_region
          %s341 = sand.u32 %s19, 1
          %s342 = scalar_lea.sflag [#allocation4], %s341
          %s343 = sand.u32 %s176, 1
          %s344 = smul.addr %s343, 2048
          %s345 = scalar_lea.vmem [#allocation13], %s344
          %s346 = smul.u32 4, %s19
          %s348 = ssub.s32 32768, 32768
          %349 = vsyncadd %s342, %s348
          %s350 = smul.addr %s346, 128
          %s351 = scalar_lea.hbm %s7, %s350
          %s352 = sshll.u32 %s345, 4
          %s353 = int_to_ptr.vmem [resolvable:$true] %s352
          %358 = dma.hbm_to_vmem [thread:$0]  %s351, 32768, %s353, %s342, 1024, 512, 32
        $region48: #{generator_forward.1} parent=43 // pred_fallthru
          _
        // Predicated region
        $region49: #{generator_forward.1} parent=43 // pred_check
          %p359 = pneg %p212
        $region50: #{generator_forward.1} parent=43 // pred_check_branch
          %361 = sbr.rel (%p359) target = $region52
        $region51: #{generator_forward.1} parent=43 // pred_region
          %s362 = sand.u32 %s19, 1
          %s363 = scalar_lea.sflag [#allocation4], %s362
          %s364 = sand.u32 %s202, 1
          %s365 = smul.addr %s364, 4
          %s366 = scalar_lea.vmem [#allocation14], %s365
          %s367 = smul.u32 4, %s19
          %s369 = ssub.s32 64, 64
          %370 = vsyncadd %s363, %s369
          %s371 = smul.addr %s367, 16
          %s372 = scalar_lea.hbm %s8, %s371
          %s374 = sshll.u32 %s366, 4
          %s375 = int_to_ptr.vmem [resolvable:$true] %s374
          %377 = dma.hbm_to_vmem [thread:$0]  %s372, 64, %s375, %s363
        $region52: #{generator_forward.1} parent=43 // pred_fallthru
          _
      $region44: #{generator_forward.1} parent=5 // pred_fallthru
        _
      %p378 = scmp.le.s32.totalorder 1, %s19
      %p379 = scmp.lt.s32.totalorder %s19, 3
      %p380 = pnand %p378, %p379
      %p381 = pneg %p380
      // Predicated region
      $region53: #{generator_forward.1} parent=5 // pred_check
        _
      $region54: #{generator_forward.1} parent=5 // pred_check_branch
        %383 = sbr.rel (%p380) target = $region56
      $region55: #{generator_forward.1} parent=5 // pred_region
        %s384 = ssub.s32 %s19, 1
        // Predicated region
        $region57: #{generator_forward.1} parent=55 // pred_check
          %p385 = pneg %p61
        $region58: #{generator_forward.1} parent=55 // pred_check_branch
          %387 = sbr.rel (%p385) target = $region60
        $region59: #{generator_forward.1} parent=55 // pred_region
          %388 = dma.done [#allocation4], 2048
        $region60: #{generator_forward.1} parent=55 // pred_fallthru
          _
        // Predicated region
        $region61: #{generator_forward.1} parent=55 // pred_check
          %p389 = pneg %p82
        $region62: #{generator_forward.1} parent=55 // pred_check_branch
          %391 = sbr.rel (%p389) target = $region64
        $region63: #{generator_forward.1} parent=55 // pred_region
          %392 = dma.done [#allocation6], 16
        $region64: #{generator_forward.1} parent=55 // pred_fallthru
          _
        // Predicated region
        $region65: #{generator_forward.1} parent=55 // pred_check
          %p393 = pneg %p103
        $region66: #{generator_forward.1} parent=55 // pred_check_branch
          %395 = sbr.rel (%p393) target = $region68
        $region67: #{generator_forward.1} parent=55 // pred_region
          %396 = dma.done [#allocation6], 4096
        $region68: #{generator_forward.1} parent=55 // pred_fallthru
          _
        // Predicated region
        $region69: #{generator_forward.1} parent=55 // pred_check
          %p397 = pneg %p124
        $region70: #{generator_forward.1} parent=55 // pred_check_branch
          %399 = sbr.rel (%p397) target = $region72
        $region71: #{generator_forward.1} parent=55 // pred_region
          %400 = dma.done [#allocation9], 32
        $region72: #{generator_forward.1} parent=55 // pred_fallthru
          _
        // Predicated region
        $region73: #{generator_forward.1} parent=55 // pred_check
          %p401 = pneg %p145
        $region74: #{generator_forward.1} parent=55 // pred_check_branch
          %403 = sbr.rel (%p401) target = $region76
        $region75: #{generator_forward.1} parent=55 // pred_region
          %404 = dma.done [#allocation9], 16384
        $region76: #{generator_forward.1} parent=55 // pred_fallthru
          _
        // Predicated region
        $region77: #{generator_forward.1} parent=55 // pred_check
          %p405 = pneg %p166
        $region78: #{generator_forward.1} parent=55 // pred_check_branch
          %407 = sbr.rel (%p405) target = $region80
        $region79: #{generator_forward.1} parent=55 // pred_region
          %408 = dma.done [#allocation12], 64
        $region80: #{generator_forward.1} parent=55 // pred_fallthru
          _
        %s409 = sand.u32 %s24, 1
        %s410 = scalar_lea.sflag [#allocation4], %s409
        %s411 = sand.u32 %s179, 1
        %s412 = smul.addr %s411, 2048
        %s413 = scalar_lea.vmem [#allocation13], %s412
        // Predicated region
        $region81: #{generator_forward.1} parent=55 // pred_check
          %p414 = pneg %p192
        $region82: #{generator_forward.1} parent=55 // pred_check_branch
          %416 = sbr.rel (%p414) target = $region84
        $region83: #{generator_forward.1} parent=55 // pred_region
          %417 = dma.done %s410, 32768
        $region84: #{generator_forward.1} parent=55 // pred_fallthru
          _
        %s418 = sand.u32 %s24, 1
        %s419 = scalar_lea.sflag [#allocation4], %s418
        %s420 = sand.u32 %s205, 1
        %s421 = smul.addr %s420, 4
        %s422 = scalar_lea.vmem [#allocation14], %s421
        // Predicated region
        $region85: #{generator_forward.1} parent=55 // pred_check
          %p423 = pneg %p218
        $region86: #{generator_forward.1} parent=55 // pred_check_branch
          %425 = sbr.rel (%p423) target = $region88
        $region87: #{generator_forward.1} parent=55 // pred_region
          %426 = dma.done %s419, 64
        $region88: #{generator_forward.1} parent=55 // pred_fallthru
          _
        %p427 = pneg %p40
        %p428 = pneg %p37
        %p429 = pneg %p61
        %p430 = pneg %p58
        %p431 = pneg %p82
        %p432 = pneg %p79
        %p433 = pneg %p103
        %p434 = pneg %p100
        %p435 = pneg %p124
        %p436 = pneg %p121
        %p437 = pneg %p145
        %p438 = pneg %p142
        %p439 = pneg %p166
        %p440 = pneg %p163
        %s441 = sand.u32 %s24, 1
        %s442 = scalar_lea.sflag [#allocation4], %s441
        %s443 = sand.u32 %s179, 1
        %s444 = smul.addr %s443, 2048
        %s445 = scalar_lea.vmem [#allocation13], %s444
        %p446 = pneg %p192
        %p447 = pneg %p189
        %s448 = sand.u32 %s24, 1
        %s449 = scalar_lea.sflag [#allocation4], %s448
        %s450 = sand.u32 %s205, 1
        %s451 = smul.addr %s450, 4
        %s452 = scalar_lea.vmem [#allocation14], %s451
        %p453 = pneg %p218
        %p454 = pneg %p215
        %p455 = pneg %p244
        %p456 = pneg %p241
        %s457 = smul.u32 4, %s24
        %p458 = scmp.lt.s32.totalorder %s457, 7
        %s459 = scalar_select %p458, %s457, 7
        %s460 = smul.addr %s459, 8
        %s461 = scalar_lea.vmem %s9, %s460
        %s462 = smul.u32 4, %s24
        %s463 = smul.u32 4, %s24
        %s464 = smul.u32 4, %s24
        %p465 = scmp.lt.s32.totalorder %s464, 7
        %s466 = scalar_select %p465, %s464, 7
        %s467 = smul.addr %s466, 8
        %s468 = scalar_lea.vmem %s9, %s467
        %s469 = smul.u32 4, %s24
        %p470 = scmp.eq.s32.totalorder %s24, 0
        // Predicated region
        $region89: #{generator_forward.1} parent=55 // pred_check
          %p471 = pneg %p470
        $region90: #{generator_forward.1} parent=55 // pred_check_branch
          %473 = sbr.rel (%p471) target = $region92
        $region91: #{generator_forward.1} parent=55 // pred_region
          %v474 = vld [vmem:[%s0] sm:$0xff]
          %v475 = vld [vmem:[#allocation3] sm:$0xff]
          %v476 = vld [vmem:[#allocation3 + $0x8] sm:$0xff]
          %v477 = vld [vmem:[#allocation3 + $0x10] sm:$0xff]
          %v478 = vld [vmem:[#allocation3 + $0x18] sm:$0xff]
          %v479 = vld [vmem:[#allocation3 + $0x20] sm:$0xff]
          %v480 = vld [vmem:[#allocation3 + $0x28] sm:$0xff]
          %v481 = vld [vmem:[#allocation3 + $0x30] sm:$0xff]
          %v482 = vld [vmem:[#allocation3 + $0x38] sm:$0xff]
          %v483 = vld [vmem:[#allocation3 + $0x40] sm:$0xff]
          %v484 = vld [vmem:[#allocation3 + $0x48] sm:$0xff]
          %v485 = vld [vmem:[#allocation3 + $0x50] sm:$0xff]
          %v486 = vld [vmem:[#allocation3 + $0x58] sm:$0xff]
          %v487 = vld [vmem:[#allocation3 + $0x60] sm:$0xff]
          %v488 = vld [vmem:[#allocation3 + $0x68] sm:$0xff]
          %v489 = vld [vmem:[#allocation3 + $0x70] sm:$0xff]
          %v490 = vld [vmem:[#allocation3 + $0x78] sm:$0xff]
          %v491 = vld [vmem:[#allocation5] sm:$0x1]
          %v493 = vlaneseq
          %v494 = vshrl.u32 %v493, 7
          %v495 = vsub.s32 0, %v494
          %v496 = vrot.slane %v491, %v495
          %498 = vmatprep.subr.mxu0 0.0
          %499 = vmatpush1.msra.mxu0 %v490
          %500 = vmatprep.subr.mxu0 0.0
          %501 = vmatpush1.msra.mxu0 %v489
          %502 = vmatprep.subr.mxu0 0.0
          %503 = vmatpush1.msra.mxu0 %v488
          %504 = vmatprep.subr.mxu0 0.0
          %505 = vmatpush1.msra.mxu0 %v487
          %506 = vmatprep.subr.mxu0 0.0
          %507 = vmatpush1.msra.mxu0 %v486
          %508 = vmatprep.subr.mxu0 0.0
          %509 = vmatpush1.msra.mxu0 %v485
          %510 = vmatprep.subr.mxu0 0.0
          %511 = vmatpush1.msra.mxu0 %v484
          %512 = vmatprep.subr.mxu0 0.0
          %513 = vmatpush1.msra.mxu0 %v483
          %514 = vmatprep.subr.mxu0 0.0
          %515 = vmatpush1.msra.mxu0 %v482
          %516 = vmatprep.subr.mxu0 0.0
          %517 = vmatpush1.msra.mxu0 %v481
          %518 = vmatprep.subr.mxu0 0.0
          %519 = vmatpush1.msra.mxu0 %v480
          %520 = vmatprep.subr.mxu0 0.0
          %521 = vmatpush1.msra.mxu0 %v479
          %522 = vmatprep.subr.mxu0 0.0
          %523 = vmatpush1.msra.mxu0 %v478
          %524 = vmatprep.subr.mxu0 0.0
          %525 = vmatpush1.msra.mxu0 %v477
          %526 = vmatprep.subr.mxu0 0.0
          %527 = vmatpush1.msra.mxu0 %v476
          %528 = vmatprep.subr.mxu0 0.0
          %529 = vmatpush1.msra.mxu0 %v475
          %530 = vmatprep.subr.mxu0 0.0
          %531 = vmatpush2.msra.mxu0 0.0
          %532 = vmatprep.subr.mxu0 0.0
          %533 = vmatpush2.msra.mxu0 0.0
          %534 = vmatprep.subr.mxu0 0.0
          %535 = vmatpush2.msra.mxu0 0.0
          %536 = vmatprep.subr.mxu0 0.0
          %537 = vmatpush2.msra.mxu0 0.0
          %538 = vmatprep.subr.mxu0 0.0
          %539 = vmatpush2.msra.mxu0 0.0
          %540 = vmatprep.subr.mxu0 0.0
          %541 = vmatpush2.msra.mxu0 0.0
          %542 = vmatprep.subr.mxu0 0.0
          %543 = vmatpush2.msra.mxu0 0.0
          %544 = vmatprep.subr.mxu0 0.0
          %545 = vmatpush2.msra.mxu0 0.0
          %546 = vmatprep.subr.mxu0 0.0
          %547 = vmatpush2.msra.mxu0 0.0
          %548 = vmatprep.subr.mxu0 0.0
          %549 = vmatpush2.msra.mxu0 0.0
          %550 = vmatprep.subr.mxu0 0.0
          %551 = vmatpush2.msra.mxu0 0.0
          %552 = vmatprep.subr.mxu0 0.0
          %553 = vmatpush2.msra.mxu0 0.0
          %554 = vmatprep.subr.mxu0 0.0
          %555 = vmatpush2.msra.mxu0 0.0
          %556 = vmatprep.subr.mxu0 0.0
          %557 = vmatpush2.msra.mxu0 0.0
          %558 = vmatprep.subr.mxu0 0.0
          %559 = vmatpush2.msra.mxu0 0.0
          %560 = vmatprep.subr.mxu0 0.0
          %561 = vmatpush2.msra.mxu0 0.0
          %562 = vmatprep.mubr.f32.mxu0 0.0
          %563 = vmatmul.mubr.f32.gmra.mxu0 %v474
          %v564 = vpop.f32.mrf.mxu0
          %v565 = vadd.f32 %v496, %v564
          %v566 = vpop.f32.mrf.mxu0
          %567 = vdwg.mxu0
          %vm568 = vcmp.ge.f32.partialorder %v565, 0.0
          %v569 = vmul.f32 %v565, 0.2
          %v570 = vsel %vm568, %v565, %v569
          %v571 = vld [vmem:[#allocation7] sm:$0xff]
          %v572 = vld [vmem:[#allocation7 + $0x8] sm:$0xff]
          %v573 = vld [vmem:[#allocation7 + $0x10] sm:$0xff]
          %v574 = vld [vmem:[#allocation7 + $0x18] sm:$0xff]
          %v575 = vld [vmem:[#allocation7 + $0x20] sm:$0xff]
          %v576 = vld [vmem:[#allocation7 + $0x28] sm:$0xff]
          %v577 = vld [vmem:[#allocation7 + $0x30] sm:$0xff]
          %v578 = vld [vmem:[#allocation7 + $0x38] sm:$0xff]
          %v579 = vld [vmem:[#allocation7 + $0x40] sm:$0xff]
          %v580 = vld [vmem:[#allocation7 + $0x48] sm:$0xff]
          %v581 = vld [vmem:[#allocation7 + $0x50] sm:$0xff]
          %v582 = vld [vmem:[#allocation7 + $0x58] sm:$0xff]
          %v583 = vld [vmem:[#allocation7 + $0x60] sm:$0xff]
          %v584 = vld [vmem:[#allocation7 + $0x68] sm:$0xff]
          %v585 = vld [vmem:[#allocation7 + $0x70] sm:$0xff]
          %v586 = vld [vmem:[#allocation7 + $0x78] sm:$0xff]
          %v587 = vld [vmem:[#allocation7 + $0x80] sm:$0xff]
          %v588 = vld [vmem:[#allocation7 + $0x88] sm:$0xff]
          %v589 = vld [vmem:[#allocation7 + $0x90] sm:$0xff]
          %v590 = vld [vmem:[#allocation7 + $0x98] sm:$0xff]
          %v591 = vld [vmem:[#allocation7 + $0xa0] sm:$0xff]
          %v592 = vld [vmem:[#allocation7 + $0xa8] sm:$0xff]
          %v593 = vld [vmem:[#allocation7 + $0xb0] sm:$0xff]
          %v594 = vld [vmem:[#allocation7 + $0xb8] sm:$0xff]
          %v595 = vld [vmem:[#allocation7 + $0xc0] sm:$0xff]
          %v596 = vld [vmem:[#allocation7 + $0xc8] sm:$0xff]
          %v597 = vld [vmem:[#allocation7 + $0xd0] sm:$0xff]
          %v598 = vld [vmem:[#allocation7 + $0xd8] sm:$0xff]
          %v599 = vld [vmem:[#allocation7 + $0xe0] sm:$0xff]
          %v600 = vld [vmem:[#allocation7 + $0xe8] sm:$0xff]
          %v601 = vld [vmem:[#allocation7 + $0xf0] sm:$0xff]
          %v602 = vld [vmem:[#allocation7 + $0xf8] sm:$0xff]
          %v603 = vld [vmem:[#allocation8] sm:$0x3]
          %v605 = vlaneseq
          %v606 = vshrl.u32 %v605, 7
          %v607 = vsub.s32 0, %v606
          %v608 = vrot.slane %v603, %v607
          %v609 = vlaneseq
          %v610 = vshrl.u32 %v609, 7
          %v611 = vsub.s32 1, %v610
          %v612 = vrot.slane %v603, %v611
          %615 = vmatprep.subr.mxu0 %v602
          %616 = vmatpush1.msra.mxu0 %v601
          %617 = vmatprep.subr.mxu0 %v600
          %618 = vmatpush1.msra.mxu0 %v599
          %619 = vmatprep.subr.mxu0 %v598
          %620 = vmatpush1.msra.mxu0 %v597
          %621 = vmatprep.subr.mxu0 %v596
          %622 = vmatpush1.msra.mxu0 %v595
          %623 = vmatprep.subr.mxu0 %v594
          %624 = vmatpush1.msra.mxu0 %v593
          %625 = vmatprep.subr.mxu0 %v592
          %626 = vmatpush1.msra.mxu0 %v591
          %627 = vmatprep.subr.mxu0 %v590
          %628 = vmatpush1.msra.mxu0 %v589
          %629 = vmatprep.subr.mxu0 %v588
          %630 = vmatpush1.msra.mxu0 %v587
          %631 = vmatprep.subr.mxu0 %v586
          %632 = vmatpush1.msra.mxu0 %v585
          %633 = vmatprep.subr.mxu0 %v584
          %634 = vmatpush1.msra.mxu0 %v583
          %635 = vmatprep.subr.mxu0 %v582
          %636 = vmatpush1.msra.mxu0 %v581
          %637 = vmatprep.subr.mxu0 %v580
          %638 = vmatpush1.msra.mxu0 %v579
          %639 = vmatprep.subr.mxu0 %v578
          %640 = vmatpush1.msra.mxu0 %v577
          %641 = vmatprep.subr.mxu0 %v576
          %642 = vmatpush1.msra.mxu0 %v575
          %643 = vmatprep.subr.mxu0 %v574
          %644 = vmatpush1.msra.mxu0 %v573
          %645 = vmatprep.subr.mxu0 %v572
          %646 = vmatpush1.msra.mxu0 %v571
          %647 = vmatprep.subr.mxu0 0.0
          %648 = vmatpush2.msra.mxu0 0.0
          %649 = vmatprep.subr.mxu0 0.0
          %650 = vmatpush2.msra.mxu0 0.0
          %651 = vmatprep.subr.mxu0 0.0
          %652 = vmatpush2.msra.mxu0 0.0
          %653 = vmatprep.subr.mxu0 0.0
          %654 = vmatpush2.msra.mxu0 0.0
          %655 = vmatprep.subr.mxu0 0.0
          %656 = vmatpush2.msra.mxu0 0.0
          %657 = vmatprep.subr.mxu0 0.0
          %658 = vmatpush2.msra.mxu0 0.0
          %659 = vmatprep.subr.mxu0 0.0
          %660 = vmatpush2.msra.mxu0 0.0
          %661 = vmatprep.subr.mxu0 0.0
          %662 = vmatpush2.msra.mxu0 0.0
          %663 = vmatprep.subr.mxu0 0.0
          %664 = vmatpush2.msra.mxu0 0.0
          %665 = vmatprep.subr.mxu0 0.0
          %666 = vmatpush2.msra.mxu0 0.0
          %667 = vmatprep.subr.mxu0 0.0
          %668 = vmatpush2.msra.mxu0 0.0
          %669 = vmatprep.subr.mxu0 0.0
          %670 = vmatpush2.msra.mxu0 0.0
          %671 = vmatprep.subr.mxu0 0.0
          %672 = vmatpush2.msra.mxu0 0.0
          %673 = vmatprep.subr.mxu0 0.0
          %674 = vmatpush2.msra.mxu0 0.0
          %675 = vmatprep.subr.mxu0 0.0
          %676 = vmatpush2.msra.mxu0 0.0
          %677 = vmatprep.subr.mxu0 0.0
          %678 = vmatpush2.msra.mxu0 0.0
          %679 = vmatprep.mubr.f32.mxu0 0.0
          %680 = vmatmul.mubr.f32.gmra.mxu0 %v570
          %v681 = vpop.f32.mrf.mxu0
          %v682 = vadd.f32 %v608, %v681
          %v683 = vpop.f32.mrf.mxu0
          %v684 = vadd.f32 %v612, %v683
          %685 = vdwg.mxu0
          %vm686 = vcmp.ge.f32.partialorder %v682, 0.0
          %vm687 = vcmp.ge.f32.partialorder %v684, 0.0
          %v688 = vmul.f32 %v682, 0.2
          %v689 = vmul.f32 %v684, 0.2
          %v690 = vsel %vm686, %v682, %v688
          %v691 = vsel %vm687, %v684, %v689
          %v692 = vld [vmem:[#allocation10] sm:$0xff]
          %v693 = vld [vmem:[#allocation10 + $0x8] sm:$0xff]
          %v694 = vld [vmem:[#allocation10 + $0x10] sm:$0xff]
          %v695 = vld [vmem:[#allocation10 + $0x18] sm:$0xff]
          %v696 = vld [vmem:[#allocation10 + $0x20] sm:$0xff]
          %v697 = vld [vmem:[#allocation10 + $0x28] sm:$0xff]
          %v698 = vld [vmem:[#allocation10 + $0x30] sm:$0xff]
          %v699 = vld [vmem:[#allocation10 + $0x38] sm:$0xff]
          %v700 = vld [vmem:[#allocation10 + $0x40] sm:$0xff]
          %v701 = vld [vmem:[#allocation10 + $0x48] sm:$0xff]
          %v702 = vld [vmem:[#allocation10 + $0x50] sm:$0xff]
          %v703 = vld [vmem:[#allocation10 + $0x58] sm:$0xff]
          %v704 = vld [vmem:[#allocation10 + $0x60] sm:$0xff]
          %v705 = vld [vmem:[#allocation10 + $0x68] sm:$0xff]
          %v706 = vld [vmem:[#allocation10 + $0x70] sm:$0xff]
          %v707 = vld [vmem:[#allocation10 + $0x78] sm:$0xff]
          %v708 = vld [vmem:[#allocation10 + $0x80] sm:$0xff]
          %v709 = vld [vmem:[#allocation10 + $0x88] sm:$0xff]
          %v710 = vld [vmem:[#allocation10 + $0x90] sm:$0xff]
          %v711 = vld [vmem:[#allocation10 + $0x98] sm:$0xff]
          %v712 = vld [vmem:[#allocation10 + $0xa0] sm:$0xff]
          %v713 = vld [vmem:[#allocation10 + $0xa8] sm:$0xff]
          %v714 = vld [vmem:[#allocation10 + $0xb0] sm:$0xff]
          %v715 = vld [vmem:[#allocation10 + $0xb8] sm:$0xff]
          %v716 = vld [vmem:[#allocation10 + $0xc0] sm:$0xff]
          %v717 = vld [vmem:[#allocation10 + $0xc8] sm:$0xff]
          %v718 = vld [vmem:[#allocation10 + $0xd0] sm:$0xff]
          %v719 = vld [vmem:[#allocation10 + $0xd8] sm:$0xff]
          %v720 = vld [vmem:[#allocation10 + $0xe0] sm:$0xff]
          %v721 = vld [vmem:[#allocation10 + $0xe8] sm:$0xff]
          %v722 = vld [vmem:[#allocation10 + $0xf0] sm:$0xff]
          %v723 = vld [vmem:[#allocation10 + $0xf8] sm:$0xff]
          %v724 = vld [vmem:[#allocation10 + $0x100] sm:$0xff]
          %v725 = vld [vmem:[#allocation10 + $0x108] sm:$0xff]
          %v726 = vld [vmem:[#allocation10 + $0x110] sm:$0xff]
          %v727 = vld [vmem:[#allocation10 + $0x118] sm:$0xff]
          %v728 = vld [vmem:[#allocation10 + $0x120] sm:$0xff]
          %v729 = vld [vmem:[#allocation10 + $0x128] sm:$0xff]
          %v730 = vld [vmem:[#allocation10 + $0x130] sm:$0xff]
          %v731 = vld [vmem:[#allocation10 + $0x138] sm:$0xff]
          %v732 = vld [vmem:[#allocation10 + $0x140] sm:$0xff]
          %v733 = vld [vmem:[#allocation10 + $0x148] sm:$0xff]
          %v734 = vld [vmem:[#allocation10 + $0x150] sm:$0xff]
          %v735 = vld [vmem:[#allocation10 + $0x158] sm:$0xff]
          %v736 = vld [vmem:[#allocation10 + $0x160] sm:$0xff]
          %v737 = vld [vmem:[#allocation10 + $0x168] sm:$0xff]
          %v738 = vld [vmem:[#allocation10 + $0x170] sm:$0xff]
          %v739 = vld [vmem:[#allocation10 + $0x178] sm:$0xff]
          %v740 = vld [vmem:[#allocation10 + $0x180] sm:$0xff]
          %v741 = vld [vmem:[#allocation10 + $0x188] sm:$0xff]
          %v742 = vld [vmem:[#allocation10 + $0x190] sm:$0xff]
          %v743 = vld [vmem:[#allocation10 + $0x198] sm:$0xff]
          %v744 = vld [vmem:[#allocation10 + $0x1a0] sm:$0xff]
          %v745 = vld [vmem:[#allocation10 + $0x1a8] sm:$0xff]
          %v746 = vld [vmem:[#allocation10 + $0x1b0] sm:$0xff]
          %v747 = vld [vmem:[#allocation10 + $0x1b8] sm:$0xff]
          %v748 = vld [vmem:[#allocation10 + $0x1c0] sm:$0xff]
          %v749 = vld [vmem:[#allocation10 + $0x1c8] sm:$0xff]
          %v750 = vld [vmem:[#allocation10 + $0x1d0] sm:$0xff]
          %v751 = vld [vmem:[#allocation10 + $0x1d8] sm:$0xff]
          %v752 = vld [vmem:[#allocation10 + $0x1e0] sm:$0xff]
          %v753 = vld [vmem:[#allocation10 + $0x1e8] sm:$0xff]
          %v754 = vld [vmem:[#allocation10 + $0x1f0] sm:$0xff]
          %v755 = vld [vmem:[#allocation10 + $0x1f8] sm:$0xff]
          %v756 = vld [vmem:[#allocation10 + $0x200] sm:$0xff]
          %v757 = vld [vmem:[#allocation10 + $0x208] sm:$0xff]
          %v758 = vld [vmem:[#allocation10 + $0x210] sm:$0xff]
          %v759 = vld [vmem:[#allocation10 + $0x218] sm:$0xff]
          %v760 = vld [vmem:[#allocation10 + $0x220] sm:$0xff]
          %v761 = vld [vmem:[#allocation10 + $0x228] sm:$0xff]
          %v762 = vld [vmem:[#allocation10 + $0x230] sm:$0xff]
          %v763 = vld [vmem:[#allocation10 + $0x238] sm:$0xff]
          %v764 = vld [vmem:[#allocation10 + $0x240] sm:$0xff]
          %v765 = vld [vmem:[#allocation10 + $0x248] sm:$0xff]
          %v766 = vld [vmem:[#allocation10 + $0x250] sm:$0xff]
          %v767 = vld [vmem:[#allocation10 + $0x258] sm:$0xff]
          %v768 = vld [vmem:[#allocation10 + $0x260] sm:$0xff]
          %v769 = vld [vmem:[#allocation10 + $0x268] sm:$0xff]
          %v770 = vld [vmem:[#allocation10 + $0x270] sm:$0xff]
          %v771 = vld [vmem:[#allocation10 + $0x278] sm:$0xff]
          %v772 = vld [vmem:[#allocation10 + $0x280] sm:$0xff]
          %v773 = vld [vmem:[#allocation10 + $0x288] sm:$0xff]
          %v774 = vld [vmem:[#allocation10 + $0x290] sm:$0xff]
          %v775 = vld [vmem:[#allocation10 + $0x298] sm:$0xff]
          %v776 = vld [vmem:[#allocation10 + $0x2a0] sm:$0xff]
          %v777 = vld [vmem:[#allocation10 + $0x2a8] sm:$0xff]
          %v778 = vld [vmem:[#allocation10 + $0x2b0] sm:$0xff]
          %v779 = vld [vmem:[#allocation10 + $0x2b8] sm:$0xff]
          %v780 = vld [vmem:[#allocation10 + $0x2c0] sm:$0xff]
          %v781 = vld [vmem:[#allocation10 + $0x2c8] sm:$0xff]
          %v782 = vld [vmem:[#allocation10 + $0x2d0] sm:$0xff]
          %v783 = vld [vmem:[#allocation10 + $0x2d8] sm:$0xff]
          %v784 = vld [vmem:[#allocation10 + $0x2e0] sm:$0xff]
          %v785 = vld [vmem:[#allocation10 + $0x2e8] sm:$0xff]
          %v786 = vld [vmem:[#allocation10 + $0x2f0] sm:$0xff]
          %v787 = vld [vmem:[#allocation10 + $0x2f8] sm:$0xff]
          %v788 = vld [vmem:[#allocation10 + $0x300] sm:$0xff]
          %v789 = vld [vmem:[#allocation10 + $0x308] sm:$0xff]
          %v790 = vld [vmem:[#allocation10 + $0x310] sm:$0xff]
          %v791 = vld [vmem:[#allocation10 + $0x318] sm:$0xff]
          %v792 = vld [vmem:[#allocation10 + $0x320] sm:$0xff]
          %v793 = vld [vmem:[#allocation10 + $0x328] sm:$0xff]
          %v794 = vld [vmem:[#allocation10 + $0x330] sm:$0xff]
          %v795 = vld [vmem:[#allocation10 + $0x338] sm:$0xff]
          %v796 = vld [vmem:[#allocation10 + $0x340] sm:$0xff]
          %v797 = vld [vmem:[#allocation10 + $0x348] sm:$0xff]
          %v798 = vld [vmem:[#allocation10 + $0x350] sm:$0xff]
          %v799 = vld [vmem:[#allocation10 + $0x358] sm:$0xff]
          %v800 = vld [vmem:[#allocation10 + $0x360] sm:$0xff]
          %v801 = vld [vmem:[#allocation10 + $0x368] sm:$0xff]
          %v802 = vld [vmem:[#allocation10 + $0x370] sm:$0xff]
          %v803 = vld [vmem:[#allocation10 + $0x378] sm:$0xff]
          %v804 = vld [vmem:[#allocation10 + $0x380] sm:$0xff]
          %v805 = vld [vmem:[#allocation10 + $0x388] sm:$0xff]
          %v806 = vld [vmem:[#allocation10 + $0x390] sm:$0xff]
          %v807 = vld [vmem:[#allocation10 + $0x398] sm:$0xff]
          %v808 = vld [vmem:[#allocation10 + $0x3a0] sm:$0xff]
          %v809 = vld [vmem:[#allocation10 + $0x3a8] sm:$0xff]
          %v810 = vld [vmem:[#allocation10 + $0x3b0] sm:$0xff]
          %v811 = vld [vmem:[#allocation10 + $0x3b8] sm:$0xff]
          %v812 = vld [vmem:[#allocation10 + $0x3c0] sm:$0xff]
          %v813 = vld [vmem:[#allocation10 + $0x3c8] sm:$0xff]
          %v814 = vld [vmem:[#allocation10 + $0x3d0] sm:$0xff]
          %v815 = vld [vmem:[#allocation10 + $0x3d8] sm:$0xff]
          %v816 = vld [vmem:[#allocation10 + $0x3e0] sm:$0xff]
          %v817 = vld [vmem:[#allocation10 + $0x3e8] sm:$0xff]
          %v818 = vld [vmem:[#allocation10 + $0x3f0] sm:$0xff]
          %v819 = vld [vmem:[#allocation10 + $0x3f8] sm:$0xff]
          %v820 = vld [vmem:[#allocation11] sm:$0xf]
          %v822 = vlaneseq
          %v823 = vshrl.u32 %v822, 7
          %v824 = vsub.s32 0, %v823
          %v825 = vrot.slane %v820, %v824
          %v826 = vlaneseq
          %v827 = vshrl.u32 %v826, 7
          %v828 = vsub.s32 1, %v827
          %v829 = vrot.slane %v820, %v828
          %v830 = vlaneseq
          %v831 = vshrl.u32 %v830, 7
          %v832 = vsub.s32 2, %v831
          %v833 = vrot.slane %v820, %v832
          %v834 = vlaneseq
          %v835 = vshrl.u32 %v834, 7
          %v836 = vsub.s32 3, %v835
          %v837 = vrot.slane %v820, %v836
          %842 = vmatprep.subr.mxu0 %v753
          %843 = vmatpush1.msra.mxu0 %v752
          %844 = vmatprep.subr.mxu0 %v749
          %845 = vmatpush1.msra.mxu0 %v748
          %846 = vmatprep.subr.mxu0 %v745
          %847 = vmatpush1.msra.mxu0 %v744
          %848 = vmatprep.subr.mxu0 %v741
          %849 = vmatpush1.msra.mxu0 %v740
          %850 = vmatprep.subr.mxu0 %v737
          %851 = vmatpush1.msra.mxu0 %v736
          %852 = vmatprep.subr.mxu0 %v733
          %853 = vmatpush1.msra.mxu0 %v732
          %854 = vmatprep.subr.mxu0 %v729
          %855 = vmatpush1.msra.mxu0 %v728
          %856 = vmatprep.subr.mxu0 %v725
          %857 = vmatpush1.msra.mxu0 %v724
          %858 = vmatprep.subr.mxu0 %v721
          %859 = vmatpush1.msra.mxu0 %v720
          %860 = vmatprep.subr.mxu0 %v717
          %861 = vmatpush1.msra.mxu0 %v716
          %862 = vmatprep.subr.mxu0 %v713
          %863 = vmatpush1.msra.mxu0 %v712
          %864 = vmatprep.subr.mxu0 %v709
          %865 = vmatpush1.msra.mxu0 %v708
          %866 = vmatprep.subr.mxu0 %v705
          %867 = vmatpush1.msra.mxu0 %v704
          %868 = vmatprep.subr.mxu0 %v701
          %869 = vmatpush1.msra.mxu0 %v700
          %870 = vmatprep.subr.mxu0 %v697
          %871 = vmatpush1.msra.mxu0 %v696
          %872 = vmatprep.subr.mxu0 %v693
          %873 = vmatpush1.msra.mxu0 %v692
          %874 = vmatprep.subr.mxu0 %v817
          %875 = vmatpush2.msra.mxu0 %v816
          %876 = vmatprep.subr.mxu0 %v813
          %877 = vmatpush2.msra.mxu0 %v812
          %878 = vmatprep.subr.mxu0 %v809
          %879 = vmatpush2.msra.mxu0 %v808
          %880 = vmatprep.subr.mxu0 %v805
          %881 = vmatpush2.msra.mxu0 %v804
          %882 = vmatprep.subr.mxu0 %v801
          %883 = vmatpush2.msra.mxu0 %v800
          %884 = vmatprep.subr.mxu0 %v797
          %885 = vmatpush2.msra.mxu0 %v796
          %886 = vmatprep.subr.mxu0 %v793
          %887 = vmatpush2.msra.mxu0 %v792
          %888 = vmatprep.subr.mxu0 %v789
          %889 = vmatpush2.msra.mxu0 %v788
          %890 = vmatprep.subr.mxu0 %v785
          %891 = vmatpush2.msra.mxu0 %v784
          %892 = vmatprep.subr.mxu0 %v781
          %893 = vmatpush2.msra.mxu0 %v780
          %894 = vmatprep.subr.mxu0 %v777
          %895 = vmatpush2.msra.mxu0 %v776
          %896 = vmatprep.subr.mxu0 %v773
          %897 = vmatpush2.msra.mxu0 %v772
          %898 = vmatprep.subr.mxu0 %v769
          %899 = vmatpush2.msra.mxu0 %v768
          %900 = vmatprep.subr.mxu0 %v765
          %901 = vmatpush2.msra.mxu0 %v764
          %902 = vmatprep.subr.mxu0 %v761
          %903 = vmatpush2.msra.mxu0 %v760
          %904 = vmatprep.subr.mxu0 %v757
          %905 = vmatpush2.msra.mxu0 %v756
          %906 = vmatprep.mubr.f32.mxu0 %v691
          %907 = vmatmul.mubr.f32.gmra.mxu0 %v690
          %v908 = vpop.f32.mrf.mxu0
          %v909 = vadd.f32 %v825, %v908
          %v910 = vpop.f32.mrf.mxu0
          %v911 = vadd.f32 %v829, %v910
          %912 = vdwg.mxu0
          %913 = vmatprep.subr.mxu0 %v755
          %914 = vmatpush1.msra.mxu0 %v754
          %915 = vmatprep.subr.mxu0 %v751
          %916 = vmatpush1.msra.mxu0 %v750
          %917 = vmatprep.subr.mxu0 %v747
          %918 = vmatpush1.msra.mxu0 %v746
          %919 = vmatprep.subr.mxu0 %v743
          %920 = vmatpush1.msra.mxu0 %v742
          %921 = vmatprep.subr.mxu0 %v739
          %922 = vmatpush1.msra.mxu0 %v738
          %923 = vmatprep.subr.mxu0 %v735
          %924 = vmatpush1.msra.mxu0 %v734
          %925 = vmatprep.subr.mxu0 %v731
          %926 = vmatpush1.msra.mxu0 %v730
          %927 = vmatprep.subr.mxu0 %v727
          %928 = vmatpush1.msra.mxu0 %v726
          %929 = vmatprep.subr.mxu0 %v723
          %930 = vmatpush1.msra.mxu0 %v722
          %931 = vmatprep.subr.mxu0 %v719
          %932 = vmatpush1.msra.mxu0 %v718
          %933 = vmatprep.subr.mxu0 %v715
          %934 = vmatpush1.msra.mxu0 %v714
          %935 = vmatprep.subr.mxu0 %v711
          %936 = vmatpush1.msra.mxu0 %v710
          %937 = vmatprep.subr.mxu0 %v707
          %938 = vmatpush1.msra.mxu0 %v706
          %939 = vmatprep.subr.mxu0 %v703
          %940 = vmatpush1.msra.mxu0 %v702
          %941 = vmatprep.subr.mxu0 %v699
          %942 = vmatpush1.msra.mxu0 %v698
          %943 = vmatprep.subr.mxu0 %v695
          %944 = vmatpush1.msra.mxu0 %v694
          %945 = vmatprep.subr.mxu0 %v819
          %946 = vmatpush2.msra.mxu0 %v818
          %947 = vmatprep.subr.mxu0 %v815
          %948 = vmatpush2.msra.mxu0 %v814
          %949 = vmatprep.subr.mxu0 %v811
          %950 = vmatpush2.msra.mxu0 %v810
          %951 = vmatprep.subr.mxu0 %v807
          %952 = vmatpush2.msra.mxu0 %v806
          %953 = vmatprep.subr.mxu0 %v803
          %954 = vmatpush2.msra.mxu0 %v802
          %955 = vmatprep.subr.mxu0 %v799
          %956 = vmatpush2.msra.mxu0 %v798
          %957 = vmatprep.subr.mxu0 %v795
          %958 = vmatpush2.msra.mxu0 %v794
          %959 = vmatprep.subr.mxu0 %v791
          %960 = vmatpush2.msra.mxu0 %v790
          %961 = vmatprep.subr.mxu0 %v787
          %962 = vmatpush2.msra.mxu0 %v786
          %963 = vmatprep.subr.mxu0 %v783
          %964 = vmatpush2.msra.mxu0 %v782
          %965 = vmatprep.subr.mxu0 %v779
          %966 = vmatpush2.msra.mxu0 %v778
          %967 = vmatprep.subr.mxu0 %v775
          %968 = vmatpush2.msra.mxu0 %v774
          %969 = vmatprep.subr.mxu0 %v771
          %970 = vmatpush2.msra.mxu0 %v770
          %971 = vmatprep.subr.mxu0 %v767
          %972 = vmatpush2.msra.mxu0 %v766
          %973 = vmatprep.subr.mxu0 %v763
          %974 = vmatpush2.msra.mxu0 %v762
          %975 = vmatprep.subr.mxu0 %v759
          %976 = vmatpush2.msra.mxu0 %v758
          %977 = vmatprep.mubr.f32.mxu0 %v691
          %978 = vmatmul.mubr.f32.gmra.mxu0 %v690
          %v979 = vpop.f32.mrf.mxu0
          %v980 = vadd.f32 %v833, %v979
          %v981 = vpop.f32.mrf.mxu0
          %v982 = vadd.f32 %v837, %v981
          %983 = vdwg.mxu0
          %vm984 = vcmp.ge.f32.partialorder %v909, 0.0
          %vm985 = vcmp.ge.f32.partialorder %v911, 0.0
          %vm986 = vcmp.ge.f32.partialorder %v980, 0.0
          %vm987 = vcmp.ge.f32.partialorder %v982, 0.0
          %v988 = vmul.f32 %v909, 0.2
          %v989 = vmul.f32 %v911, 0.2
          %v990 = vmul.f32 %v980, 0.2
          %v991 = vmul.f32 %v982, 0.2
          %v992 = vsel %vm984, %v909, %v988
          %v993 = vsel %vm985, %v911, %v989
          %v994 = vsel %vm986, %v980, %v990
          %v995 = vsel %vm987, %v982, %v991
          %996 = vst [vmem:[#allocation2] sm:$0xff] %v992
          %997 = vst [vmem:[#allocation2 + $0x8] sm:$0xff] %v993
          %998 = vst [vmem:[#allocation2 + $0x10] sm:$0xff] %v994
          %999 = vst [vmem:[#allocation2 + $0x18] sm:$0xff] %v995
        $region92: #{generator_forward.1} parent=55 // pred_fallthru
          _
        %v1000 = vld [vmem:[#allocation2] sm:$0xff]
        %v1001 = vld [vmem:[#allocation2 + $0x8] sm:$0xff]
        %v1002 = vld [vmem:[#allocation2 + $0x10] sm:$0xff]
        %v1003 = vld [vmem:[#allocation2 + $0x18] sm:$0xff]
        %v1004 = vld [vmem:[%s413] sm:$0xff]
        %v1005 = vld [vmem:[%s413 + $0x8] sm:$0xff]
        %v1006 = vld [vmem:[%s413 + $0x10] sm:$0xff]
        %v1007 = vld [vmem:[%s413 + $0x18] sm:$0xff]
        %v1008 = vld [vmem:[%s413 + $0x20] sm:$0xff]
        %v1009 = vld [vmem:[%s413 + $0x28] sm:$0xff]
        %v1010 = vld [vmem:[%s413 + $0x30] sm:$0xff]
        %v1011 = vld [vmem:[%s413 + $0x38] sm:$0xff]
        %v1012 = vld [vmem:[%s413 + $0x40] sm:$0xff]
        %v1013 = vld [vmem:[%s413 + $0x48] sm:$0xff]
        %v1014 = vld [vmem:[%s413 + $0x50] sm:$0xff]
        %v1015 = vld [vmem:[%s413 + $0x58] sm:$0xff]
        %v1016 = vld [vmem:[%s413 + $0x60] sm:$0xff]
        %v1017 = vld [vmem:[%s413 + $0x68] sm:$0xff]
        %v1018 = vld [vmem:[%s413 + $0x70] sm:$0xff]
        %v1019 = vld [vmem:[%s413 + $0x78] sm:$0xff]
        %v1020 = vld [vmem:[%s413 + $0x80] sm:$0xff]
        %v1021 = vld [vmem:[%s413 + $0x88] sm:$0xff]
        %v1022 = vld [vmem:[%s413 + $0x90] sm:$0xff]
        %v1023 = vld [vmem:[%s413 + $0x98] sm:$0xff]
        %v1024 = vld [vmem:[%s413 + $0xa0] sm:$0xff]
        %v1025 = vld [vmem:[%s413 + $0xa8] sm:$0xff]
        %v1026 = vld [vmem:[%s413 + $0xb0] sm:$0xff]
        %v1027 = vld [vmem:[%s413 + $0xb8] sm:$0xff]
        %v1028 = vld [vmem:[%s413 + $0xc0] sm:$0xff]
        %v1029 = vld [vmem:[%s413 + $0xc8] sm:$0xff]
        %v1030 = vld [vmem:[%s413 + $0xd0] sm:$0xff]
        %v1031 = vld [vmem:[%s413 + $0xd8] sm:$0xff]
        %v1032 = vld [vmem:[%s413 + $0xe0] sm:$0xff]
        %v1033 = vld [vmem:[%s413 + $0xe8] sm:$0xff]
        %v1034 = vld [vmem:[%s413 + $0xf0] sm:$0xff]
        %v1035 = vld [vmem:[%s413 + $0xf8] sm:$0xff]
        %v1036 = vld [vmem:[%s413 + $0x100] sm:$0xff]
        %v1037 = vld [vmem:[%s413 + $0x108] sm:$0xff]
        %v1038 = vld [vmem:[%s413 + $0x110] sm:$0xff]
        %v1039 = vld [vmem:[%s413 + $0x118] sm:$0xff]
        %v1040 = vld [vmem:[%s413 + $0x120] sm:$0xff]
        %v1041 = vld [vmem:[%s413 + $0x128] sm:$0xff]
        %v1042 = vld [vmem:[%s413 + $0x130] sm:$0xff]
        %v1043 = vld [vmem:[%s413 + $0x138] sm:$0xff]
        %v1044 = vld [vmem:[%s413 + $0x140] sm:$0xff]
        %v1045 = vld [vmem:[%s413 + $0x148] sm:$0xff]
        %v1046 = vld [vmem:[%s413 + $0x150] sm:$0xff]
        %v1047 = vld [vmem:[%s413 + $0x158] sm:$0xff]
        %v1048 = vld [vmem:[%s413 + $0x160] sm:$0xff]
        %v1049 = vld [vmem:[%s413 + $0x168] sm:$0xff]
        %v1050 = vld [vmem:[%s413 + $0x170] sm:$0xff]
        %v1051 = vld [vmem:[%s413 + $0x178] sm:$0xff]
        %v1052 = vld [vmem:[%s413 + $0x180] sm:$0xff]
        %v1053 = vld [vmem:[%s413 + $0x188] sm:$0xff]
        %v1054 = vld [vmem:[%s413 + $0x190] sm:$0xff]
        %v1055 = vld [vmem:[%s413 + $0x198] sm:$0xff]
        %v1056 = vld [vmem:[%s413 + $0x1a0] sm:$0xff]
        %v1057 = vld [vmem:[%s413 + $0x1a8] sm:$0xff]
        %v1058 = vld [vmem:[%s413 + $0x1b0] sm:$0xff]
        %v1059 = vld [vmem:[%s413 + $0x1b8] sm:$0xff]
        %v1060 = vld [vmem:[%s413 + $0x1c0] sm:$0xff]
        %v1061 = vld [vmem:[%s413 + $0x1c8] sm:$0xff]
        %v1062 = vld [vmem:[%s413 + $0x1d0] sm:$0xff]
        %v1063 = vld [vmem:[%s413 + $0x1d8] sm:$0xff]
        %v1064 = vld [vmem:[%s413 + $0x1e0] sm:$0xff]
        %v1065 = vld [vmem:[%s413 + $0x1e8] sm:$0xff]
        %v1066 = vld [vmem:[%s413 + $0x1f0] sm:$0xff]
        %v1067 = vld [vmem:[%s413 + $0x1f8] sm:$0xff]
        %v1068 = vld [vmem:[%s413 + $0x200] sm:$0xff]
        %v1069 = vld [vmem:[%s413 + $0x208] sm:$0xff]
        %v1070 = vld [vmem:[%s413 + $0x210] sm:$0xff]
        %v1071 = vld [vmem:[%s413 + $0x218] sm:$0xff]
        %v1072 = vld [vmem:[%s413 + $0x220] sm:$0xff]
        %v1073 = vld [vmem:[%s413 + $0x228] sm:$0xff]
        %v1074 = vld [vmem:[%s413 + $0x230] sm:$0xff]
        %v1075 = vld [vmem:[%s413 + $0x238] sm:$0xff]
        %v1076 = vld [vmem:[%s413 + $0x240] sm:$0xff]
        %v1077 = vld [vmem:[%s413 + $0x248] sm:$0xff]
        %v1078 = vld [vmem:[%s413 + $0x250] sm:$0xff]
        %v1079 = vld [vmem:[%s413 + $0x258] sm:$0xff]
        %v1080 = vld [vmem:[%s413 + $0x260] sm:$0xff]
        %v1081 = vld [vmem:[%s413 + $0x268] sm:$0xff]
        %v1082 = vld [vmem:[%s413 + $0x270] sm:$0xff]
        %v1083 = vld [vmem:[%s413 + $0x278] sm:$0xff]
        %v1084 = vld [vmem:[%s413 + $0x280] sm:$0xff]
        %v1085 = vld [vmem:[%s413 + $0x288] sm:$0xff]
        %v1086 = vld [vmem:[%s413 + $0x290] sm:$0xff]
        %v1087 = vld [vmem:[%s413 + $0x298] sm:$0xff]
        %v1088 = vld [vmem:[%s413 + $0x2a0] sm:$0xff]
        %v1089 = vld [vmem:[%s413 + $0x2a8] sm:$0xff]
        %v1090 = vld [vmem:[%s413 + $0x2b0] sm:$0xff]
        %v1091 = vld [vmem:[%s413 + $0x2b8] sm:$0xff]
        %v1092 = vld [vmem:[%s413 + $0x2c0] sm:$0xff]
        %v1093 = vld [vmem:[%s413 + $0x2c8] sm:$0xff]
        %v1094 = vld [vmem:[%s413 + $0x2d0] sm:$0xff]
        %v1095 = vld [vmem:[%s413 + $0x2d8] sm:$0xff]
        %v1096 = vld [vmem:[%s413 + $0x2e0] sm:$0xff]
        %v1097 = vld [vmem:[%s413 + $0x2e8] sm:$0xff]
        %v1098 = vld [vmem:[%s413 + $0x2f0] sm:$0xff]
        %v1099 = vld [vmem:[%s413 + $0x2f8] sm:$0xff]
        %v1100 = vld [vmem:[%s413 + $0x300] sm:$0xff]
        %v1101 = vld [vmem:[%s413 + $0x308] sm:$0xff]
        %v1102 = vld [vmem:[%s413 + $0x310] sm:$0xff]
        %v1103 = vld [vmem:[%s413 + $0x318] sm:$0xff]
        %v1104 = vld [vmem:[%s413 + $0x320] sm:$0xff]
        %v1105 = vld [vmem:[%s413 + $0x328] sm:$0xff]
        %v1106 = vld [vmem:[%s413 + $0x330] sm:$0xff]
        %v1107 = vld [vmem:[%s413 + $0x338] sm:$0xff]
        %v1108 = vld [vmem:[%s413 + $0x340] sm:$0xff]
        %v1109 = vld [vmem:[%s413 + $0x348] sm:$0xff]
        %v1110 = vld [vmem:[%s413 + $0x350] sm:$0xff]
        %v1111 = vld [vmem:[%s413 + $0x358] sm:$0xff]
        %v1112 = vld [vmem:[%s413 + $0x360] sm:$0xff]
        %v1113 = vld [vmem:[%s413 + $0x368] sm:$0xff]
        %v1114 = vld [vmem:[%s413 + $0x370] sm:$0xff]
        %v1115 = vld [vmem:[%s413 + $0x378] sm:$0xff]
        %v1116 = vld [vmem:[%s413 + $0x380] sm:$0xff]
        %v1117 = vld [vmem:[%s413 + $0x388] sm:$0xff]
        %v1118 = vld [vmem:[%s413 + $0x390] sm:$0xff]
        %v1119 = vld [vmem:[%s413 + $0x398] sm:$0xff]
        %v1120 = vld [vmem:[%s413 + $0x3a0] sm:$0xff]
        %v1121 = vld [vmem:[%s413 + $0x3a8] sm:$0xff]
        %v1122 = vld [vmem:[%s413 + $0x3b0] sm:$0xff]
        %v1123 = vld [vmem:[%s413 + $0x3b8] sm:$0xff]
        %v1124 = vld [vmem:[%s413 + $0x3c0] sm:$0xff]
        %v1125 = vld [vmem:[%s413 + $0x3c8] sm:$0xff]
        %v1126 = vld [vmem:[%s413 + $0x3d0] sm:$0xff]
        %v1127 = vld [vmem:[%s413 + $0x3d8] sm:$0xff]
        %v1128 = vld [vmem:[%s413 + $0x3e0] sm:$0xff]
        %v1129 = vld [vmem:[%s413 + $0x3e8] sm:$0xff]
        %v1130 = vld [vmem:[%s413 + $0x3f0] sm:$0xff]
        %v1131 = vld [vmem:[%s413 + $0x3f8] sm:$0xff]
        %v1132 = vld [vmem:[%s413 + $0x400] sm:$0xff]
        %v1133 = vld [vmem:[%s413 + $0x408] sm:$0xff]
        %v1134 = vld [vmem:[%s413 + $0x410] sm:$0xff]
        %v1135 = vld [vmem:[%s413 + $0x418] sm:$0xff]
        %v1136 = vld [vmem:[%s413 + $0x420] sm:$0xff]
        %v1137 = vld [vmem:[%s413 + $0x428] sm:$0xff]
        %v1138 = vld [vmem:[%s413 + $0x430] sm:$0xff]
        %v1139 = vld [vmem:[%s413 + $0x438] sm:$0xff]
        %v1140 = vld [vmem:[%s413 + $0x440] sm:$0xff]
        %v1141 = vld [vmem:[%s413 + $0x448] sm:$0xff]
        %v1142 = vld [vmem:[%s413 + $0x450] sm:$0xff]
        %v1143 = vld [vmem:[%s413 + $0x458] sm:$0xff]
        %v1144 = vld [vmem:[%s413 + $0x460] sm:$0xff]
        %v1145 = vld [vmem:[%s413 + $0x468] sm:$0xff]
        %v1146 = vld [vmem:[%s413 + $0x470] sm:$0xff]
        %v1147 = vld [vmem:[%s413 + $0x478] sm:$0xff]
        %v1148 = vld [vmem:[%s413 + $0x480] sm:$0xff]
        %v1149 = vld [vmem:[%s413 + $0x488] sm:$0xff]
        %v1150 = vld [vmem:[%s413 + $0x490] sm:$0xff]
        %v1151 = vld [vmem:[%s413 + $0x498] sm:$0xff]
        %v1152 = vld [vmem:[%s413 + $0x4a0] sm:$0xff]
        %v1153 = vld [vmem:[%s413 + $0x4a8] sm:$0xff]
        %v1154 = vld [vmem:[%s413 + $0x4b0] sm:$0xff]
        %v1155 = vld [vmem:[%s413 + $0x4b8] sm:$0xff]
        %v1156 = vld [vmem:[%s413 + $0x4c0] sm:$0xff]
        %v1157 = vld [vmem:[%s413 + $0x4c8] sm:$0xff]
        %v1158 = vld [vmem:[%s413 + $0x4d0] sm:$0xff]
        %v1159 = vld [vmem:[%s413 + $0x4d8] sm:$0xff]
        %v1160 = vld [vmem:[%s413 + $0x4e0] sm:$0xff]
        %v1161 = vld [vmem:[%s413 + $0x4e8] sm:$0xff]
        %v1162 = vld [vmem:[%s413 + $0x4f0] sm:$0xff]
        %v1163 = vld [vmem:[%s413 + $0x4f8] sm:$0xff]
        %v1164 = vld [vmem:[%s413 + $0x500] sm:$0xff]
        %v1165 = vld [vmem:[%s413 + $0x508] sm:$0xff]
        %v1166 = vld [vmem:[%s413 + $0x510] sm:$0xff]
        %v1167 = vld [vmem:[%s413 + $0x518] sm:$0xff]
        %v1168 = vld [vmem:[%s413 + $0x520] sm:$0xff]
        %v1169 = vld [vmem:[%s413 + $0x528] sm:$0xff]
        %v1170 = vld [vmem:[%s413 + $0x530] sm:$0xff]
        %v1171 = vld [vmem:[%s413 + $0x538] sm:$0xff]
        %v1172 = vld [vmem:[%s413 + $0x540] sm:$0xff]
        %v1173 = vld [vmem:[%s413 + $0x548] sm:$0xff]
        %v1174 = vld [vmem:[%s413 + $0x550] sm:$0xff]
        %v1175 = vld [vmem:[%s413 + $0x558] sm:$0xff]
        %v1176 = vld [vmem:[%s413 + $0x560] sm:$0xff]
        %v1177 = vld [vmem:[%s413 + $0x568] sm:$0xff]
        %v1178 = vld [vmem:[%s413 + $0x570] sm:$0xff]
        %v1179 = vld [vmem:[%s413 + $0x578] sm:$0xff]
        %v1180 = vld [vmem:[%s413 + $0x580] sm:$0xff]
        %v1181 = vld [vmem:[%s413 + $0x588] sm:$0xff]
        %v1182 = vld [vmem:[%s413 + $0x590] sm:$0xff]
        %v1183 = vld [vmem:[%s413 + $0x598] sm:$0xff]
        %v1184 = vld [vmem:[%s413 + $0x5a0] sm:$0xff]
        %v1185 = vld [vmem:[%s413 + $0x5a8] sm:$0xff]
        %v1186 = vld [vmem:[%s413 + $0x5b0] sm:$0xff]
        %v1187 = vld [vmem:[%s413 + $0x5b8] sm:$0xff]
        %v1188 = vld [vmem:[%s413 + $0x5c0] sm:$0xff]
        %v1189 = vld [vmem:[%s413 + $0x5c8] sm:$0xff]
        %v1190 = vld [vmem:[%s413 + $0x5d0] sm:$0xff]
        %v1191 = vld [vmem:[%s413 + $0x5d8] sm:$0xff]
        %v1192 = vld [vmem:[%s413 + $0x5e0] sm:$0xff]
        %v1193 = vld [vmem:[%s413 + $0x5e8] sm:$0xff]
        %v1194 = vld [vmem:[%s413 + $0x5f0] sm:$0xff]
        %v1195 = vld [vmem:[%s413 + $0x5f8] sm:$0xff]
        %v1196 = vld [vmem:[%s413 + $0x600] sm:$0xff]
        %v1197 = vld [vmem:[%s413 + $0x608] sm:$0xff]
        %v1198 = vld [vmem:[%s413 + $0x610] sm:$0xff]
        %v1199 = vld [vmem:[%s413 + $0x618] sm:$0xff]
        %v1200 = vld [vmem:[%s413 + $0x620] sm:$0xff]
        %v1201 = vld [vmem:[%s413 + $0x628] sm:$0xff]
        %v1202 = vld [vmem:[%s413 + $0x630] sm:$0xff]
        %v1203 = vld [vmem:[%s413 + $0x638] sm:$0xff]
        %v1204 = vld [vmem:[%s413 + $0x640] sm:$0xff]
        %v1205 = vld [vmem:[%s413 + $0x648] sm:$0xff]
        %v1206 = vld [vmem:[%s413 + $0x650] sm:$0xff]
        %v1207 = vld [vmem:[%s413 + $0x658] sm:$0xff]
        %v1208 = vld [vmem:[%s413 + $0x660] sm:$0xff]
        %v1209 = vld [vmem:[%s413 + $0x668] sm:$0xff]
        %v1210 = vld [vmem:[%s413 + $0x670] sm:$0xff]
        %v1211 = vld [vmem:[%s413 + $0x678] sm:$0xff]
        %v1212 = vld [vmem:[%s413 + $0x680] sm:$0xff]
        %v1213 = vld [vmem:[%s413 + $0x688] sm:$0xff]
        %v1214 = vld [vmem:[%s413 + $0x690] sm:$0xff]
        %v1215 = vld [vmem:[%s413 + $0x698] sm:$0xff]
        %v1216 = vld [vmem:[%s413 + $0x6a0] sm:$0xff]
        %v1217 = vld [vmem:[%s413 + $0x6a8] sm:$0xff]
        %v1218 = vld [vmem:[%s413 + $0x6b0] sm:$0xff]
        %v1219 = vld [vmem:[%s413 + $0x6b8] sm:$0xff]
        %v1220 = vld [vmem:[%s413 + $0x6c0] sm:$0xff]
        %v1221 = vld [vmem:[%s413 + $0x6c8] sm:$0xff]
        %v1222 = vld [vmem:[%s413 + $0x6d0] sm:$0xff]
        %v1223 = vld [vmem:[%s413 + $0x6d8] sm:$0xff]
        %v1224 = vld [vmem:[%s413 + $0x6e0] sm:$0xff]
        %v1225 = vld [vmem:[%s413 + $0x6e8] sm:$0xff]
        %v1226 = vld [vmem:[%s413 + $0x6f0] sm:$0xff]
        %v1227 = vld [vmem:[%s413 + $0x6f8] sm:$0xff]
        %v1228 = vld [vmem:[%s413 + $0x700] sm:$0xff]
        %v1229 = vld [vmem:[%s413 + $0x708] sm:$0xff]
        %v1230 = vld [vmem:[%s413 + $0x710] sm:$0xff]
        %v1231 = vld [vmem:[%s413 + $0x718] sm:$0xff]
        %v1232 = vld [vmem:[%s413 + $0x720] sm:$0xff]
        %v1233 = vld [vmem:[%s413 + $0x728] sm:$0xff]
        %v1234 = vld [vmem:[%s413 + $0x730] sm:$0xff]
        %v1235 = vld [vmem:[%s413 + $0x738] sm:$0xff]
        %v1236 = vld [vmem:[%s413 + $0x740] sm:$0xff]
        %v1237 = vld [vmem:[%s413 + $0x748] sm:$0xff]
        %v1238 = vld [vmem:[%s413 + $0x750] sm:$0xff]
        %v1239 = vld [vmem:[%s413 + $0x758] sm:$0xff]
        %v1240 = vld [vmem:[%s413 + $0x760] sm:$0xff]
        %v1241 = vld [vmem:[%s413 + $0x768] sm:$0xff]
        %v1242 = vld [vmem:[%s413 + $0x770] sm:$0xff]
        %v1243 = vld [vmem:[%s413 + $0x778] sm:$0xff]
        %v1244 = vld [vmem:[%s413 + $0x780] sm:$0xff]
        %v1245 = vld [vmem:[%s413 + $0x788] sm:$0xff]
        %v1246 = vld [vmem:[%s413 + $0x790] sm:$0xff]
        %v1247 = vld [vmem:[%s413 + $0x798] sm:$0xff]
        %v1248 = vld [vmem:[%s413 + $0x7a0] sm:$0xff]
        %v1249 = vld [vmem:[%s413 + $0x7a8] sm:$0xff]
        %v1250 = vld [vmem:[%s413 + $0x7b0] sm:$0xff]
        %v1251 = vld [vmem:[%s413 + $0x7b8] sm:$0xff]
        %v1252 = vld [vmem:[%s413 + $0x7c0] sm:$0xff]
        %v1253 = vld [vmem:[%s413 + $0x7c8] sm:$0xff]
        %v1254 = vld [vmem:[%s413 + $0x7d0] sm:$0xff]
        %v1255 = vld [vmem:[%s413 + $0x7d8] sm:$0xff]
        %v1256 = vld [vmem:[%s413 + $0x7e0] sm:$0xff]
        %v1257 = vld [vmem:[%s413 + $0x7e8] sm:$0xff]
        %v1258 = vld [vmem:[%s413 + $0x7f0] sm:$0xff]
        %v1259 = vld [vmem:[%s413 + $0x7f8] sm:$0xff]
        %v1260 = vld [vmem:[%s422] sm:$0xf]
        %v1262 = vlaneseq
        %v1263 = vshrl.u32 %v1262, 7
        %v1264 = vsub.s32 0, %v1263
        %v1265 = vrot.slane %v1260, %v1264
        %v1266 = vlaneseq
        %v1267 = vshrl.u32 %v1266, 7
        %v1268 = vsub.s32 1, %v1267
        %v1269 = vrot.slane %v1260, %v1268
        %v1270 = vlaneseq
        %v1271 = vshrl.u32 %v1270, 7
        %v1272 = vsub.s32 2, %v1271
        %v1273 = vrot.slane %v1260, %v1272
        %v1274 = vlaneseq
        %v1275 = vshrl.u32 %v1274, 7
        %v1276 = vsub.s32 3, %v1275
        %v1277 = vrot.slane %v1260, %v1276
        %1282 = vmatprep.subr.mxu0 %v1065
        %1283 = vmatpush1.msra.mxu0 %v1064
        %1284 = vmatprep.subr.mxu0 %v1061
        %1285 = vmatpush1.msra.mxu0 %v1060
        %1286 = vmatprep.subr.mxu0 %v1057
        %1287 = vmatpush1.msra.mxu0 %v1056
        %1288 = vmatprep.subr.mxu0 %v1053
        %1289 = vmatpush1.msra.mxu0 %v1052
        %1290 = vmatprep.subr.mxu0 %v1049
        %1291 = vmatpush1.msra.mxu0 %v1048
        %1292 = vmatprep.subr.mxu0 %v1045
        %1293 = vmatpush1.msra.mxu0 %v1044
        %1294 = vmatprep.subr.mxu0 %v1041
        %1295 = vmatpush1.msra.mxu0 %v1040
        %1296 = vmatprep.subr.mxu0 %v1037
        %1297 = vmatpush1.msra.mxu0 %v1036
        %1298 = vmatprep.subr.mxu0 %v1033
        %1299 = vmatpush1.msra.mxu0 %v1032
        %1300 = vmatprep.subr.mxu0 %v1029
        %1301 = vmatpush1.msra.mxu0 %v1028
        %1302 = vmatprep.subr.mxu0 %v1025
        %1303 = vmatpush1.msra.mxu0 %v1024
        %1304 = vmatprep.subr.mxu0 %v1021
        %1305 = vmatpush1.msra.mxu0 %v1020
        %1306 = vmatprep.subr.mxu0 %v1017
        %1307 = vmatpush1.msra.mxu0 %v1016
        %1308 = vmatprep.subr.mxu0 %v1013
        %1309 = vmatpush1.msra.mxu0 %v1012
        %1310 = vmatprep.subr.mxu0 %v1009
        %1311 = vmatpush1.msra.mxu0 %v1008
        %1312 = vmatprep.subr.mxu0 %v1005
        %1313 = vmatpush1.msra.mxu0 %v1004
        %1314 = vmatprep.subr.mxu0 %v1129
        %1315 = vmatpush2.msra.mxu0 %v1128
        %1316 = vmatprep.subr.mxu0 %v1125
        %1317 = vmatpush2.msra.mxu0 %v1124
        %1318 = vmatprep.subr.mxu0 %v1121
        %1319 = vmatpush2.msra.mxu0 %v1120
        %1320 = vmatprep.subr.mxu0 %v1117
        %1321 = vmatpush2.msra.mxu0 %v1116
        %1322 = vmatprep.subr.mxu0 %v1113
        %1323 = vmatpush2.msra.mxu0 %v1112
        %1324 = vmatprep.subr.mxu0 %v1109
        %1325 = vmatpush2.msra.mxu0 %v1108
        %1326 = vmatprep.subr.mxu0 %v1105
        %1327 = vmatpush2.msra.mxu0 %v1104
        %1328 = vmatprep.subr.mxu0 %v1101
        %1329 = vmatpush2.msra.mxu0 %v1100
        %1330 = vmatprep.subr.mxu0 %v1097
        %1331 = vmatpush2.msra.mxu0 %v1096
        %1332 = vmatprep.subr.mxu0 %v1093
        %1333 = vmatpush2.msra.mxu0 %v1092
        %1334 = vmatprep.subr.mxu0 %v1089
        %1335 = vmatpush2.msra.mxu0 %v1088
        %1336 = vmatprep.subr.mxu0 %v1085
        %1337 = vmatpush2.msra.mxu0 %v1084
        %1338 = vmatprep.subr.mxu0 %v1081
        %1339 = vmatpush2.msra.mxu0 %v1080
        %1340 = vmatprep.subr.mxu0 %v1077
        %1341 = vmatpush2.msra.mxu0 %v1076
        %1342 = vmatprep.subr.mxu0 %v1073
        %1343 = vmatpush2.msra.mxu0 %v1072
        %1344 = vmatprep.subr.mxu0 %v1069
        %1345 = vmatpush2.msra.mxu0 %v1068
        %1346 = vmatprep.mubr.f32.mxu0 %v1001
        %1347 = vmatmul.mubr.f32.gmra.mxu0 %v1000
        %v1348 = vpop.f32.mrf.mxu0
        %v1349 = vadd.f32 %v1265, %v1348
        %v1350 = vpop.f32.mrf.mxu0
        %v1351 = vadd.f32 %v1269, %v1350
        %1352 = vdwg.mxu0
        %1353 = vmatprep.subr.mxu0 %v1193
        %1354 = vmatpush1.msra.mxu0 %v1192
        %1355 = vmatprep.subr.mxu0 %v1189
        %1356 = vmatpush1.msra.mxu0 %v1188
        %1357 = vmatprep.subr.mxu0 %v1185
        %1358 = vmatpush1.msra.mxu0 %v1184
        %1359 = vmatprep.subr.mxu0 %v1181
        %1360 = vmatpush1.msra.mxu0 %v1180
        %1361 = vmatprep.subr.mxu0 %v1177
        %1362 = vmatpush1.msra.mxu0 %v1176
        %1363 = vmatprep.subr.mxu0 %v1173
        %1364 = vmatpush1.msra.mxu0 %v1172
        %1365 = vmatprep.subr.mxu0 %v1169
        %1366 = vmatpush1.msra.mxu0 %v1168
        %1367 = vmatprep.subr.mxu0 %v1165
        %1368 = vmatpush1.msra.mxu0 %v1164
        %1369 = vmatprep.subr.mxu0 %v1161
        %1370 = vmatpush1.msra.mxu0 %v1160
        %1371 = vmatprep.subr.mxu0 %v1157
        %1372 = vmatpush1.msra.mxu0 %v1156
        %1373 = vmatprep.subr.mxu0 %v1153
        %1374 = vmatpush1.msra.mxu0 %v1152
        %1375 = vmatprep.subr.mxu0 %v1149
        %1376 = vmatpush1.msra.mxu0 %v1148
        %1377 = vmatprep.subr.mxu0 %v1145
        %1378 = vmatpush1.msra.mxu0 %v1144
        %1379 = vmatprep.subr.mxu0 %v1141
        %1380 = vmatpush1.msra.mxu0 %v1140
        %1381 = vmatprep.subr.mxu0 %v1137
        %1382 = vmatpush1.msra.mxu0 %v1136
        %1383 = vmatprep.subr.mxu0 %v1133
        %1384 = vmatpush1.msra.mxu0 %v1132
        %1385 = vmatprep.subr.mxu0 %v1257
        %1386 = vmatpush2.msra.mxu0 %v1256
        %1387 = vmatprep.subr.mxu0 %v1253
        %1388 = vmatpush2.msra.mxu0 %v1252
        %1389 = vmatprep.subr.mxu0 %v1249
        %1390 = vmatpush2.msra.mxu0 %v1248
        %1391 = vmatprep.subr.mxu0 %v1245
        %1392 = vmatpush2.msra.mxu0 %v1244
        %1393 = vmatprep.subr.mxu0 %v1241
        %1394 = vmatpush2.msra.mxu0 %v1240
        %1395 = vmatprep.subr.mxu0 %v1237
        %1396 = vmatpush2.msra.mxu0 %v1236
        %1397 = vmatprep.subr.mxu0 %v1233
        %1398 = vmatpush2.msra.mxu0 %v1232
        %1399 = vmatprep.subr.mxu0 %v1229
        %1400 = vmatpush2.msra.mxu0 %v1228
        %1401 = vmatprep.subr.mxu0 %v1225
        %1402 = vmatpush2.msra.mxu0 %v1224
        %1403 = vmatprep.subr.mxu0 %v1221
        %1404 = vmatpush2.msra.mxu0 %v1220
        %1405 = vmatprep.subr.mxu0 %v1217
        %1406 = vmatpush2.msra.mxu0 %v1216
        %1407 = vmatprep.subr.mxu0 %v1213
        %1408 = vmatpush2.msra.mxu0 %v1212
        %1409 = vmatprep.subr.mxu0 %v1209
        %1410 = vmatpush2.msra.mxu0 %v1208
        %1411 = vmatprep.subr.mxu0 %v1205
        %1412 = vmatpush2.msra.mxu0 %v1204
        %1413 = vmatprep.subr.mxu0 %v1201
        %1414 = vmatpush2.msra.mxu0 %v1200
        %1415 = vmatprep.subr.mxu0 %v1197
        %1416 = vmatpush2.msra.mxu0 %v1196
        %1417 = vmatprep.mubr.f32.mxu0 %v1003
        %1418 = vmatmul.mubr.f32.gmra.mxu0 %v1002
        %v1419 = vpop.f32.mrf.mxu0
        %v1420 = vadd.f32 %v1349, %v1419
        %v1421 = vpop.f32.mrf.mxu0
        %v1422 = vadd.f32 %v1351, %v1421
        %1423 = vdwg.mxu0
        %1424 = vmatprep.subr.mxu0 %v1067
        %1425 = vmatpush1.msra.mxu0 %v1066
        %1426 = vmatprep.subr.mxu0 %v1063
        %1427 = vmatpush1.msra.mxu0 %v1062
        %1428 = vmatprep.subr.mxu0 %v1059
        %1429 = vmatpush1.msra.mxu0 %v1058
        %1430 = vmatprep.subr.mxu0 %v1055
        %1431 = vmatpush1.msra.mxu0 %v1054
        %1432 = vmatprep.subr.mxu0 %v1051
        %1433 = vmatpush1.msra.mxu0 %v1050
        %1434 = vmatprep.subr.mxu0 %v1047
        %1435 = vmatpush1.msra.mxu0 %v1046
        %1436 = vmatprep.subr.mxu0 %v1043
        %1437 = vmatpush1.msra.mxu0 %v1042
        %1438 = vmatprep.subr.mxu0 %v1039
        %1439 = vmatpush1.msra.mxu0 %v1038
        %1440 = vmatprep.subr.mxu0 %v1035
        %1441 = vmatpush1.msra.mxu0 %v1034
        %1442 = vmatprep.subr.mxu0 %v1031
        %1443 = vmatpush1.msra.mxu0 %v1030
        %1444 = vmatprep.subr.mxu0 %v1027
        %1445 = vmatpush1.msra.mxu0 %v1026
        %1446 = vmatprep.subr.mxu0 %v1023
        %1447 = vmatpush1.msra.mxu0 %v1022
        %1448 = vmatprep.subr.mxu0 %v1019
        %1449 = vmatpush1.msra.mxu0 %v1018
        %1450 = vmatprep.subr.mxu0 %v1015
        %1451 = vmatpush1.msra.mxu0 %v1014
        %1452 = vmatprep.subr.mxu0 %v1011
        %1453 = vmatpush1.msra.mxu0 %v1010
        %1454 = vmatprep.subr.mxu0 %v1007
        %1455 = vmatpush1.msra.mxu0 %v1006
        %1456 = vmatprep.subr.mxu0 %v1131
        %1457 = vmatpush2.msra.mxu0 %v1130
        %1458 = vmatprep.subr.mxu0 %v1127
        %1459 = vmatpush2.msra.mxu0 %v1126
        %1460 = vmatprep.subr.mxu0 %v1123
        %1461 = vmatpush2.msra.mxu0 %v1122
        %1462 = vmatprep.subr.mxu0 %v1119
        %1463 = vmatpush2.msra.mxu0 %v1118
        %1464 = vmatprep.subr.mxu0 %v1115
        %1465 = vmatpush2.msra.mxu0 %v1114
        %1466 = vmatprep.subr.mxu0 %v1111
        %1467 = vmatpush2.msra.mxu0 %v1110
        %1468 = vmatprep.subr.mxu0 %v1107
        %1469 = vmatpush2.msra.mxu0 %v1106
        %1470 = vmatprep.subr.mxu0 %v1103
        %1471 = vmatpush2.msra.mxu0 %v1102
        %1472 = vmatprep.subr.mxu0 %v1099
        %1473 = vmatpush2.msra.mxu0 %v1098
        %1474 = vmatprep.subr.mxu0 %v1095
        %1475 = vmatpush2.msra.mxu0 %v1094
        %1476 = vmatprep.subr.mxu0 %v1091
        %1477 = vmatpush2.msra.mxu0 %v1090
        %1478 = vmatprep.subr.mxu0 %v1087
        %1479 = vmatpush2.msra.mxu0 %v1086
        %1480 = vmatprep.subr.mxu0 %v1083
        %1481 = vmatpush2.msra.mxu0 %v1082
        %1482 = vmatprep.subr.mxu0 %v1079
        %1483 = vmatpush2.msra.mxu0 %v1078
        %1484 = vmatprep.subr.mxu0 %v1075
        %1485 = vmatpush2.msra.mxu0 %v1074
        %1486 = vmatprep.subr.mxu0 %v1071
        %1487 = vmatpush2.msra.mxu0 %v1070
        %1488 = vmatprep.mubr.f32.mxu0 %v1001
        %1489 = vmatmul.mubr.f32.gmra.mxu0 %v1000
        %v1490 = vpop.f32.mrf.mxu0
        %v1491 = vadd.f32 %v1273, %v1490
        %v1492 = vpop.f32.mrf.mxu0
        %v1493 = vadd.f32 %v1277, %v1492
        %1494 = vdwg.mxu0
        %1495 = vmatprep.subr.mxu0 %v1195
        %1496 = vmatpush1.msra.mxu0 %v1194
        %1497 = vmatprep.subr.mxu0 %v1191
        %1498 = vmatpush1.msra.mxu0 %v1190
        %1499 = vmatprep.subr.mxu0 %v1187
        %1500 = vmatpush1.msra.mxu0 %v1186
        %1501 = vmatprep.subr.mxu0 %v1183
        %1502 = vmatpush1.msra.mxu0 %v1182
        %1503 = vmatprep.subr.mxu0 %v1179
        %1504 = vmatpush1.msra.mxu0 %v1178
        %1505 = vmatprep.subr.mxu0 %v1175
        %1506 = vmatpush1.msra.mxu0 %v1174
        %1507 = vmatprep.subr.mxu0 %v1171
        %1508 = vmatpush1.msra.mxu0 %v1170
        %1509 = vmatprep.subr.mxu0 %v1167
        %1510 = vmatpush1.msra.mxu0 %v1166
        %1511 = vmatprep.subr.mxu0 %v1163
        %1512 = vmatpush1.msra.mxu0 %v1162
        %1513 = vmatprep.subr.mxu0 %v1159
        %1514 = vmatpush1.msra.mxu0 %v1158
        %1515 = vmatprep.subr.mxu0 %v1155
        %1516 = vmatpush1.msra.mxu0 %v1154
        %1517 = vmatprep.subr.mxu0 %v1151
        %1518 = vmatpush1.msra.mxu0 %v1150
        %1519 = vmatprep.subr.mxu0 %v1147
        %1520 = vmatpush1.msra.mxu0 %v1146
        %1521 = vmatprep.subr.mxu0 %v1143
        %1522 = vmatpush1.msra.mxu0 %v1142
        %1523 = vmatprep.subr.mxu0 %v1139
        %1524 = vmatpush1.msra.mxu0 %v1138
        %1525 = vmatprep.subr.mxu0 %v1135
        %1526 = vmatpush1.msra.mxu0 %v1134
        %1527 = vmatprep.subr.mxu0 %v1259
        %1528 = vmatpush2.msra.mxu0 %v1258
        %1529 = vmatprep.subr.mxu0 %v1255
        %1530 = vmatpush2.msra.mxu0 %v1254
        %1531 = vmatprep.subr.mxu0 %v1251
        %1532 = vmatpush2.msra.mxu0 %v1250
        %1533 = vmatprep.subr.mxu0 %v1247
        %1534 = vmatpush2.msra.mxu0 %v1246
        %1535 = vmatprep.subr.mxu0 %v1243
        %1536 = vmatpush2.msra.mxu0 %v1242
        %1537 = vmatprep.subr.mxu0 %v1239
        %1538 = vmatpush2.msra.mxu0 %v1238
        %1539 = vmatprep.subr.mxu0 %v1235
        %1540 = vmatpush2.msra.mxu0 %v1234
        %1541 = vmatprep.subr.mxu0 %v1231
        %1542 = vmatpush2.msra.mxu0 %v1230
        %1543 = vmatprep.subr.mxu0 %v1227
        %1544 = vmatpush2.msra.mxu0 %v1226
        %1545 = vmatprep.subr.mxu0 %v1223
        %1546 = vmatpush2.msra.mxu0 %v1222
        %1547 = vmatprep.subr.mxu0 %v1219
        %1548 = vmatpush2.msra.mxu0 %v1218
        %1549 = vmatprep.subr.mxu0 %v1215
        %1550 = vmatpush2.msra.mxu0 %v1214
        %1551 = vmatprep.subr.mxu0 %v1211
        %1552 = vmatpush2.msra.mxu0 %v1210
        %1553 = vmatprep.subr.mxu0 %v1207
        %1554 = vmatpush2.msra.mxu0 %v1206
        %1555 = vmatprep.subr.mxu0 %v1203
        %1556 = vmatpush2.msra.mxu0 %v1202
        %1557 = vmatprep.subr.mxu0 %v1199
        %1558 = vmatpush2.msra.mxu0 %v1198
        %1559 = vmatprep.mubr.f32.mxu0 %v1003
        %1560 = vmatmul.mubr.f32.gmra.mxu0 %v1002
        %v1561 = vpop.f32.mrf.mxu0
        %v1562 = vadd.f32 %v1491, %v1561
        %v1563 = vpop.f32.mrf.mxu0
        %v1564 = vadd.f32 %v1493, %v1563
        %1565 = vdwg.mxu0
        %v1566 = vtanh.pop %v1420
        %v1567 = vtanh.pop %v1422
        %v1568 = vtanh.pop %v1562
        %v1569 = vtanh.pop %v1564
        %1570 = vst [vmem:[%s468] sm:$0xff] %v1566
        %1571 = vst [vmem:[%s468 + $0x8] sm:$0xff] %v1567
        %1572 = vst [vmem:[%s468 + $0x10] sm:$0xff] %v1568
        %1573 = vst [vmem:[%s468 + $0x18] sm:$0xff] %v1569
        %s1574 = smul.u32 4, %s24
        %p1575 = scmp.lt.s32.totalorder %s1574, 7
        %s1576 = scalar_select %p1575, %s1574, 7
        %s1577 = smul.addr %s1576, 8
        %s1578 = scalar_lea.vmem %s9, %s1577
        // Predicated region
        $region93: #{generator_forward.1} parent=55 // pred_check
          %p1579 = pneg %p241
        $region94: #{generator_forward.1} parent=55 // pred_check_branch
          %1581 = sbr.rel (%p1579) target = $region96
        $region95: #{generator_forward.1} parent=55 // pred_region
          %s1582 = smul.u32 4, %s24
        $region96: #{generator_forward.1} parent=55 // pred_fallthru
          _
      $region56: #{generator_forward.1} parent=5 // pred_fallthru
        _
      %p1583 = scmp.le.s32.totalorder 2, %s19
      // Predicated region
      $region97: #{generator_forward.1} parent=5 // pred_check
        %p1584 = pneg %p1583
      $region98: #{generator_forward.1} parent=5 // pred_check_branch
        %1586 = sbr.rel (%p1584) target = $region100
      $region99: #{generator_forward.1} parent=5 // pred_region
        %s1587 = ssub.s32 %s19, 2
        // Predicated region
        $region101: #{generator_forward.1} parent=99 // pred_check
          %p1588 = pneg %p247
        $region102: #{generator_forward.1} parent=99 // pred_check_branch
          %1590 = sbr.rel (%p1588) target = $region104
        $region103: #{generator_forward.1} parent=99 // pred_region
          %s1591 = smul.u32 4, %s25
          %p1592 = scmp.lt.s32.totalorder %s1591, 7
          %s1593 = scalar_select %p1592, %s1591, 7
          %s1594 = smul.addr %s1593, 8
          %s1595 = scalar_lea.vmem %s9, %s1594
        $region104: #{generator_forward.1} parent=99 // pred_fallthru
          _
      $region100: #{generator_forward.1} parent=5 // pred_fallthru
        _
    $region6: #{generator_forward.1} parent=1 // loop_footer
      %s23 = sadd.s32 1, %s19
    $region7: #{generator_forward.1} parent=1 // loop_footer_branch
      %18 = sbr.rel target = $region3
    $region8: #{generator_forward.1} parent=1 // loop_exit
      _
    %1596 = vsyncpa [#allocation4], 1
    %s1597 = scalar_lea.sflag [#allocation4], 1
    %1598 = vsyncpa %s1597, 1
    %1599 = vsyncpa [#allocation6], 1
    %1600 = vsyncpa [#allocation9], 1
    %1601 = vsyncpa [#allocation12], 1

</llo_original>
